<compile_context>
chip_gen: v5e
topology: v5e:2x2
jax: 0.10.0
libtpu: 0.0.40
codegen_flags: <defaults>
</compile_context>

<pallas_src>
import functools
import math

import jax
import jax.numpy as jnp
from jax import lax
from jax.experimental import pallas as pl
from jax.experimental.pallas import tpu as pltpu

# ---------------- module hyper-parameters (match nn.Module __init__) ----------------
CHANNELS = 16          # channels
OUT_DIMS = 16          # out_dims
DILATIONS = (1, 2, 4)  # dilations
KERNEL_SIZE = 3        # kernel_size
LAYERS_IN_BLOCK = 2    # n per ResidualBlock
C_MULTIPLE = 2
LN_EPS = 1e-5
NORM_TYPE = "ln"       # LayerNorm(channels, dim=1)

B = 2
T = 64                 # B * T = 128 -> one full vreg lane width


# ---------------- fused kernel ----------------
def _conv_blocks_kernel(x_ref, w1_ref, w2_ref, wp_ref, colp_ref, o_ref, *, seq_len):
    f32 = jnp.float32
    c, bt = x_ref.shape                      # [channels, B*T]
    out_dims = o_ref.shape[0]
    n_layers = len(DILATIONS) * LAYERS_IN_BLOCK

    x = x_ref[...].astype(f32)

    # Within-sample time index of every lane (batch packed along lanes:
    # lane = b * seq_len + t).  Used to zero conv taps that cross sample edges.
    lane = lax.broadcasted_iota(jnp.int32, (1, bt), 1)
    if seq_len & (seq_len - 1) == 0:
        t_idx = jnp.bitwise_and(lane, seq_len - 1)
    else:
        t_idx = lane % seq_len
    edge_masks = {
        d: ((t_idx >= d).astype(f32), (t_idx < seq_len - d).astype(f32))
        for d in sorted(set(DILATIONS) | {1})
    }

    def shift_lanes(v, s):
        """Circular lane shift on the XLU: out[:, i] = v[:, i - s]."""
        s = s % bt
        if s == 0:
            return v
        return pltpu.roll(v, shift=s, axis=1)

    def col(idx, rows):
        """One packed [rows, 1] parameter vector (static lane select)."""
        return colp_ref[0:rows, idx:idx + 1]

    def dilated_conv3(v, w_flat, bias, d):
        """'same'-padded kernel_size-3 dilated conv on the packed [Cin, B*T]
        slab as ONE im2col matmul.  Rows are [v[t-d]; v[t]; v[t+d]], with taps
        that fall outside a sample zeroed via the edge masks (= zero padding)."""
        m_lo, m_hi = edge_masks[d]
        left = shift_lanes(v, d) * m_lo          # out[:, t] = v[:, t - d]
        right = shift_lanes(v, -d) * m_hi        # out[:, t] = v[:, t + d]
        cols = jnp.concatenate([left, v, right], axis=0)      # [3*Cin, B*T]
        return jnp.dot(w_flat, cols, preferred_element_type=f32) + bias

    def layer_norm_ch(v, gamma, beta):
        # LayerNorm(channels, dim=1): normalize over the channel (sublane) axis.
        mean = jnp.mean(v, axis=0, keepdims=True)
        cen = v - mean
        var = jnp.mean(cen * cen, axis=0, keepdims=True)
        return cen * lax.rsqrt(var + LN_EPS) * gamma + beta

    def gelu(v):
        # exact erf GELU (nn.GELU() default)
        return 0.5 * v * (1.0 + lax.erf(v * (1.0 / math.sqrt(2.0))))

    # Nonpadding mask, computed once (the module recomputes it per block, but
    # every block ends with (x + h) * nonpadding so the support is invariant).
    nonpad = (jnp.sum(jnp.abs(x), axis=0, keepdims=True) > 0.0).astype(f32)

    li = 0
    for d in DILATIONS:                       # one ResidualBlock per dilation
        for _ in range(LAYERS_IN_BLOCK):
            gamma = col(4 * li + 0, c)                # [C, 1]
            beta = col(4 * li + 1, c)                 # [C, 1]
            b1 = colp_ref[:, 4 * li + 2:4 * li + 3]   # [2C, 1] (scale pre-folded)
            b2 = col(4 * li + 3, c)                   # [C, 1]

            h = layer_norm_ch(x, gamma, beta)
            h = dilated_conv3(h, w1_ref[li], b1, d)             # C -> 2C, dilated
            h = gelu(h)
            h = jnp.dot(w2_ref[li], h,                          # 1x1 conv: 2C -> C
                        preferred_element_type=f32) + b2
            # TODO(synk): F.dropout is training-mode only (dropout=0.0 here) -> omitted.
            x = (x + h) * nonpad
            li += 1

    x = x * nonpad                                              # res_blocks(x) * nonpadding
    x = layer_norm_ch(x, col(4 * n_layers + 0, c),
                      col(4 * n_layers + 1, c)) * nonpad        # last_norm * nonpadding
    y = dilated_conv3(x, wp_ref[...],
                      col(4 * n_layers + 2, out_dims), 1) * nonpad   # post_net1
    o_ref[...] = y.astype(o_ref.dtype)


# ---------------- parameter packing (done once, outside the kernel) ----------------
def pack_params(params):
    """Consolidate the module's parameters into 4 kernel inputs:
       w1_flat [L, 2C, K*C] (LambdaLayer scale folded in), w2 [L, C, 2C],
       w_post_flat [OUT, K*C], colp [2C, 4L+3] (all biases + LayerNorm vectors,
       channels on the sublane axis)."""
    n_layers = params["w1"].shape[0]
    c2 = C_MULTIPLE * CHANNELS
    scale = KERNEL_SIZE ** (-0.5)

    def flat_w(w):           # [..., Cout, Cin, K] -> [..., Cout, K*Cin]
        *lead, co, ci, k = w.shape
        return jnp.swapaxes(w, -1, -2).reshape(*lead, co, k * ci)

    # Fold the LambdaLayer x * K**-0.5 into conv1's weight & bias: (Wx+b)*s = (sW)x + sb.
    w1_flat = flat_w(params["w1"]) * scale      # [L, 2C, K*C]
    w2 = params["w2"]                           # [L, C, 2C]
    w_post_flat = flat_w(params["w_post"])      # [OUT, K*C]

    def pad_col(v):
        return jnp.pad(v, (0, c2 - v.shape[0]))

    cols = []
    for i in range(n_layers):
        cols += [pad_col(params["ln_g"][i]), pad_col(params["ln_b"][i]),
                 params["b1"][i] * scale, pad_col(params["b2"][i])]
    cols += [pad_col(params["last_g"]), pad_col(params["last_b"]),
             pad_col(params["b_post"])]
    colp = jnp.stack(cols, axis=1)              # [2C, 4L+3]
    return w1_flat, w2, w_post_flat, colp


# ---------------- wrapper ----------------
@jax.jit
def conv_blocks(x_btc, params):
    """ConvBlocks.forward: x [B, T, channels] -> [B, T, out_dims]."""
    bsz, seq_len, c = x_btc.shape
    bt = bsz * seq_len
    w1_flat, w2, w_post_flat, colp = pack_params(params)
    out_dims = w_post_flat.shape[0]

    # Lane-dense packing: channels on sublanes, batch*time on lanes.
    x_packed = jnp.transpose(x_btc, (2, 0, 1)).reshape(c, bt)

    out_packed = pl.pallas_call(
        functools.partial(_conv_blocks_kernel, seq_len=seq_len),
        out_shape=jax.ShapeDtypeStruct((out_dims, bt), x_btc.dtype),
        grid_spec=pltpu.PrefetchScalarGridSpec(
            num_scalar_prefetch=0,
            grid=(1,),   # whole batch in one invocation (single-TC friendly)
            in_specs=[
                pl.BlockSpec((c, bt), lambda i: (0, 0)),
                pl.BlockSpec(w1_flat.shape, lambda i: (0, 0, 0)),
                pl.BlockSpec(w2.shape, lambda i: (0, 0, 0)),
                pl.BlockSpec(w_post_flat.shape, lambda i: (0, 0)),
                pl.BlockSpec(colp.shape, lambda i: (0, 0)),
            ],
            out_specs=pl.BlockSpec((out_dims, bt), lambda i: (0, 0)),
        ),
        # TODO(synk): on v7x, split the time axis over a 2-wide "parallel" grid
        # (halo = max dilation) so both TensorCores are used.
        compiler_params=pltpu.CompilerParams(
            dimension_semantics=("arbitrary",)),
    )(x_packed, w1_flat, w2, w_post_flat, colp)

    return jnp.transpose(out_packed.reshape(out_dims, bsz, seq_len), (1, 2, 0))


# ---------------- deterministic parameter init (xavier_uniform on conv weights) -------
def init_params(key):
    n_layers = len(DILATIONS) * LAYERS_IN_BLOCK
    c, out_dims, k_sz, cm = CHANNELS, OUT_DIMS, KERNEL_SIZE, C_MULTIPLE
    keys = iter(jax.random.split(key, 4 * n_layers + 2))

    def xavier(k, cout, cin, ksz):
        a = math.sqrt(6.0 / ((cin + cout) * ksz))
        return jax.random.uniform(k, (cout, cin, ksz), jnp.float32, -a, a)

    def conv_bias(k, cout, fan_in):
        bd = 1.0 / math.sqrt(fan_in)
        return jax.random.uniform(k, (cout,), jnp.float32, -bd, bd)

    w1, b1, w2, b2 = [], [], [], []
    for _ in range(n_layers):
        w1.append(xavier(next(keys), cm * c, c, k_sz))            # [2C, C, K]
        b1.append(conv_bias(next(keys), cm * c, c * k_sz))        # [2C]
        w2.append(xavier(next(keys), c, cm * c, 1)[:, :, 0])      # [C, 2C]
        b2.append(conv_bias(next(keys), c, cm * c))               # [C]

    return {
        "w1": jnp.stack(w1), "b1": jnp.stack(b1),
        "w2": jnp.stack(w2), "b2": jnp.stack(b2),
        "ln_g": jnp.ones((n_layers, c), jnp.float32),
        "ln_b": jnp.zeros((n_layers, c), jnp.float32),
        "last_g": jnp.ones((c,), jnp.float32),
        "last_b": jnp.zeros((c,), jnp.float32),
        "w_post": xavier(next(keys), out_dims, c, 3),             # [OUT, C, 3]
        "b_post": conv_bias(next(keys), out_dims, c * 3),         # [OUT]
    }


# ---------------- pure-JAX reference (mirrors the PyTorch forward) ----------------
def reference_forward(x_btc, params):
    hp = lax.Precision.HIGHEST
    x = jnp.transpose(x_btc, (0, 2, 1))   # [B, C, T]

    def conv(xx, w, b, dil):              # w: [Cout, Cin, K]
        ksz = w.shape[-1]
        pad = dil * (ksz - 1) // 2
        out = lax.conv_general_dilated(
            xx, w, (1,), [(pad, pad)], rhs_dilation=(dil,),
            dimension_numbers=("NCH", "OIH", "NCH"), precision=hp)
        return out + b[None, :, None]

    def ln(xx, g, bta):
        m = jnp.mean(xx, axis=1, keepdims=True)
        v = jnp.mean((xx - m) ** 2, axis=1, keepdims=True)
        return (xx - m) / jnp.sqrt(v + LN_EPS) * g[None, :, None] + bta[None, :, None]

    def gelu(v):
        return 0.5 * v * (1.0 + lax.erf(v / math.sqrt(2.0)))

    def nonpad_of(xx):
        return (jnp.sum(jnp.abs(xx), axis=1, keepdims=True) > 0).astype(xx.dtype)

    np_outer = nonpad_of(x)
    li = 0
    for d in DILATIONS:
        npad = nonpad_of(x)
        for _ in range(LAYERS_IN_BLOCK):
            h = ln(x, params["ln_g"][li], params["ln_b"][li])
            h = conv(h, params["w1"][li], params["b1"][li], d)
            h = h * (KERNEL_SIZE ** -0.5)
            h = gelu(h)
            h = jnp.einsum("oc,bct->bot", params["w2"][li], h, precision=hp) \
                + params["b2"][li][None, :, None]
            x = (x + h) * npad
            li += 1
    x = x * np_outer
    x = ln(x, params["last_g"], params["last_b"]) * np_outer
    x = conv(x, params["w_post"], params["b_post"], 1) * np_outer
    return jnp.transpose(x, (0, 2, 1))    # [B, T, OUT]


if __name__ == "__main__":
    key = jax.random.PRNGKey(0)
    k_x, k_p = jax.random.split(key, 2)

    x = jax.random.normal(k_x, (B, T, CHANNELS), jnp.float32)
    # second sequence has 8 zero-padded frames at the end (exercises nonpadding)
    lengths = jnp.array([T, T - 8])
    frame_mask = (jnp.arange(T)[None, :] < lengths[:, None]).astype(jnp.float32)
    x = x * frame_mask[:, :, None]

    params = init_params(k_p)

    out = jax.block_until_ready(conv_blocks(x, params))
    assert out.shape == (B, T, OUT_DIMS), out.shape

    ref = reference_forward(x, params)
    err = float(jnp.max(jnp.abs(out - ref)))
    # 2e-2 budget covers MXU default precision in-kernel vs Precision.HIGHEST reference.
    if not (err < 2e-2):
        raise AssertionError(f"kernel/reference mismatch: max abs err = {err}")

    print("KERNEL_OK")
</pallas_src>

<mosaic_0001>
module attributes {stable_mosaic.version = 11 : i64} {
  func.func @_conv_blocks_kernel(%arg0: i32, %arg1: memref<16x128xf32, #tpu.memory_space<vmem>>, %arg2: memref<6x32x48xf32, #tpu.memory_space<vmem>>, %arg3: memref<6x16x32xf32, #tpu.memory_space<vmem>>, %arg4: memref<16x48xf32, #tpu.memory_space<vmem>>, %arg5: memref<32x27xf32, #tpu.memory_space<vmem>>, %arg6: memref<16x128xf32, #tpu.memory_space<vmem>>) attributes {dimension_semantics = [#tpu.dimension_semantics<arbitrary>], iteration_bounds = array<i64: 1>, scalar_prefetch = 0 : i64, scratch_operands = 0 : i64, tpu.core_type = #tpu.core_type<tc>, window_params = [{pipeline_mode = #tpu.pipeline_mode<synchronous>, transform_indices = @transform_0, window_bounds = array<i64: 16, 128>}, {pipeline_mode = #tpu.pipeline_mode<synchronous>, transform_indices = @transform_1, window_bounds = array<i64: 6, 32, 48>}, {pipeline_mode = #tpu.pipeline_mode<synchronous>, transform_indices = @transform_2, window_bounds = array<i64: 6, 16, 32>}, {pipeline_mode = #tpu.pipeline_mode<synchronous>, transform_indices = @transform_3, window_bounds = array<i64: 16, 48>}, {pipeline_mode = #tpu.pipeline_mode<synchronous>, transform_indices = @transform_4, window_bounds = array<i64: 32, 27>}, {pipeline_mode = #tpu.pipeline_mode<synchronous>, transform_indices = @transform_5, window_bounds = array<i64: 16, 128>}]} {
    %c0 = arith.constant 0 : index
    %c0_0 = arith.constant 0 : index
    %0 = vector.load %arg1[%c0, %c0_0] : memref<16x128xf32, #tpu.memory_space<vmem>>, vector<16x128xf32>
    %1 = tpu.iota {dimensions = array<i32: 1>} : vector<1x128xi32>
    %c63_i32 = arith.constant 63 : i32
    %2 = vector.broadcast %c63_i32 : i32 to vector<1x128xi32>
    %3 = arith.andi %1, %2 : vector<1x128xi32>
    %c1_i32 = arith.constant 1 : i32
    %4 = vector.broadcast %c1_i32 : i32 to vector<1x128xi32>
    %5 = arith.cmpi sge, %3, %4 : vector<1x128xi32>
    %6 = arith.extui %5 : vector<1x128xi1> to vector<1x128xi32>
    %7 = arith.sitofp %6 : vector<1x128xi32> to vector<1x128xf32>
    %c63_i32_1 = arith.constant 63 : i32
    %8 = vector.broadcast %c63_i32_1 : i32 to vector<1x128xi32>
    %9 = arith.cmpi slt, %3, %8 : vector<1x128xi32>
    %10 = arith.extui %9 : vector<1x128xi1> to vector<1x128xi32>
    %11 = arith.sitofp %10 : vector<1x128xi32> to vector<1x128xf32>
    %c2_i32 = arith.constant 2 : i32
    %12 = vector.broadcast %c2_i32 : i32 to vector<1x128xi32>
    %13 = arith.cmpi sge, %3, %12 : vector<1x128xi32>
    %14 = arith.extui %13 : vector<1x128xi1> to vector<1x128xi32>
    %15 = arith.sitofp %14 : vector<1x128xi32> to vector<1x128xf32>
    %c62_i32 = arith.constant 62 : i32
    %16 = vector.broadcast %c62_i32 : i32 to vector<1x128xi32>
    %17 = arith.cmpi slt, %3, %16 : vector<1x128xi32>
    %18 = arith.extui %17 : vector<1x128xi1> to vector<1x128xi32>
    %19 = arith.sitofp %18 : vector<1x128xi32> to vector<1x128xf32>
    %c4_i32 = arith.constant 4 : i32
    %20 = vector.broadcast %c4_i32 : i32 to vector<1x128xi32>
    %21 = arith.cmpi sge, %3, %20 : vector<1x128xi32>
    %22 = arith.extui %21 : vector<1x128xi1> to vector<1x128xi32>
    %23 = arith.sitofp %22 : vector<1x128xi32> to vector<1x128xf32>
    %c60_i32 = arith.constant 60 : i32
    %24 = vector.broadcast %c60_i32 : i32 to vector<1x128xi32>
    %25 = arith.cmpi slt, %3, %24 : vector<1x128xi32>
    %26 = arith.extui %25 : vector<1x128xi1> to vector<1x128xi32>
    %27 = arith.sitofp %26 : vector<1x128xi32> to vector<1x128xf32>
    %28 = math.absf %0 : vector<16x128xf32>
    %cst = arith.constant dense<0.000000e+00> : vector<128xf32>
    %29 = vector.multi_reduction <add>, %28, %cst [0] : vector<16x128xf32> to vector<128xf32>
    %30 = vector.shape_cast %29 : vector<128xf32> to vector<1x128xf32>
    %cst_2 = arith.constant 0.000000e+00 : f32
    %31 = vector.broadcast %cst_2 : f32 to vector<1x128xf32>
    %32 = arith.cmpf ogt, %30, %31 : vector<1x128xf32>
    %33 = arith.extui %32 : vector<1x128xi1> to vector<1x128xi32>
    %34 = arith.sitofp %33 : vector<1x128xi32> to vector<1x128xf32>
    %c0_3 = arith.constant 0 : index
    %c0_4 = arith.constant 0 : index
    %35 = vector.load %arg5[%c0_3, %c0_4] : memref<32x27xf32, #tpu.memory_space<vmem>>, vector<16x1xf32>
    %c0_5 = arith.constant 0 : index
    %c1 = arith.constant 1 : index
    %36 = vector.load %arg5[%c0_5, %c1] : memref<32x27xf32, #tpu.memory_space<vmem>>, vector<16x1xf32>
    %c0_6 = arith.constant 0 : index
    %c2 = arith.constant 2 : index
    %37 = vector.load %arg5[%c0_6, %c2] : memref<32x27xf32, #tpu.memory_space<vmem>>, vector<32x1xf32>
    %c0_7 = arith.constant 0 : index
    %c3 = arith.constant 3 : index
    %38 = vector.load %arg5[%c0_7, %c3] : memref<32x27xf32, #tpu.memory_space<vmem>>, vector<16x1xf32>
    %cst_8 = arith.constant dense<0.000000e+00> : vector<128xf32>
    %39 = vector.multi_reduction <add>, %0, %cst_8 [0] : vector<16x128xf32> to vector<128xf32>
    %40 = vector.shape_cast %39 : vector<128xf32> to vector<1x128xf32>
    %cst_9 = arith.constant 1.600000e+01 : f32
    %41 = vector.broadcast %cst_9 : f32 to vector<1x128xf32>
    %42 = arith.divf %40, %41 : vector<1x128xf32>
    %43 = vector.broadcast %42 : vector<1x128xf32> to vector<16x128xf32>
    %44 = arith.subf %0, %43 : vector<16x128xf32>
    %45 = arith.mulf %44, %44 : vector<16x128xf32>
    %cst_10 = arith.constant dense<0.000000e+00> : vector<128xf32>
    %46 = vector.multi_reduction <add>, %45, %cst_10 [0] : vector<16x128xf32> to vector<128xf32>
    %47 = vector.shape_cast %46 : vector<128xf32> to vector<1x128xf32>
    %cst_11 = arith.constant 1.600000e+01 : f32
    %48 = vector.broadcast %cst_11 : f32 to vector<1x128xf32>
    %49 = arith.divf %47, %48 : vector<1x128xf32>
    %cst_12 = arith.constant 9.99999974E-6 : f32
    %50 = vector.broadcast %cst_12 : f32 to vector<1x128xf32>
    %51 = arith.addf %49, %50 : vector<1x128xf32>
    %52 = math.rsqrt %51 : vector<1x128xf32>
    %53 = vector.broadcast %52 : vector<1x128xf32> to vector<16x128xf32>
    %54 = arith.mulf %44, %53 : vector<16x128xf32>
    %55 = vector.broadcast %35 : vector<16x1xf32> to vector<16x128xf32>
    %56 = arith.mulf %54, %55 : vector<16x128xf32>
    %57 = vector.broadcast %36 : vector<16x1xf32> to vector<16x128xf32>
    %58 = arith.addf %56, %57 : vector<16x128xf32>
    %c0_13 = arith.constant 0 : index
    %c0_14 = arith.constant 0 : index
    %c0_15 = arith.constant 0 : index
    %59 = vector.load %arg2[%c0_13, %c0_14, %c0_15] : memref<6x32x48xf32, #tpu.memory_space<vmem>>, vector<1x32x48xf32>
    %60 = vector.shape_cast %59 : vector<1x32x48xf32> to vector<32x48xf32>
    %c1_i32_16 = arith.constant 1 : i32
    %61 = tpu.dynamic_rotate %58 by %c1_i32_16 dim 1 : vector<16x128xf32>, i32 -> vector<16x128xf32>
    %62 = vector.broadcast %7 : vector<1x128xf32> to vector<16x128xf32>
    %63 = arith.mulf %61, %62 : vector<16x128xf32>
    %c127_i32 = arith.constant 127 : i32
    %64 = tpu.dynamic_rotate %58 by %c127_i32 dim 1 : vector<16x128xf32>, i32 -> vector<16x128xf32>
    %65 = vector.broadcast %11 : vector<1x128xf32> to vector<16x128xf32>
    %66 = arith.mulf %64, %65 : vector<16x128xf32>
    %67 = tpu.concatenate %63, %58, %66 in 0 : vector<16x128xf32>, vector<16x128xf32>, vector<16x128xf32> -> vector<48x128xf32>
    %cst_17 = arith.constant dense<0.000000e+00> : vector<32x128xf32>
    %68 = tpu.matmul %60, %67, %cst_17 {dimension_numbers = #tpu.dot_dimension_numbers<[1], [0], [0], [1], [0, 0, 1, 1], [], []>} : vector<32x48xf32>, vector<48x128xf32>, vector<32x128xf32> -> vector<32x128xf32>
    %69 = vector.broadcast %37 : vector<32x1xf32> to vector<32x128xf32>
    %70 = arith.addf %68, %69 : vector<32x128xf32>
    %cst_18 = arith.constant 5.000000e-01 : f32
    %71 = vector.broadcast %cst_18 : f32 to vector<32x128xf32>
    %72 = arith.mulf %71, %70 : vector<32x128xf32>
    %cst_19 = arith.constant 0.707106769 : f32
    %73 = vector.broadcast %cst_19 : f32 to vector<32x128xf32>
    %74 = arith.mulf %70, %73 : vector<32x128xf32>
    %75 = math.erf %74 : vector<32x128xf32>
    %cst_20 = arith.constant 1.000000e+00 : f32
    %76 = vector.broadcast %cst_20 : f32 to vector<32x128xf32>
    %77 = arith.addf %76, %75 : vector<32x128xf32>
    %78 = arith.mulf %72, %77 : vector<32x128xf32>
    %c0_21 = arith.constant 0 : index
    %c0_22 = arith.constant 0 : index
    %c0_23 = arith.constant 0 : index
    %79 = vector.load %arg3[%c0_21, %c0_22, %c0_23] : memref<6x16x32xf32, #tpu.memory_space<vmem>>, vector<1x16x32xf32>
    %80 = vector.shape_cast %79 : vector<1x16x32xf32> to vector<16x32xf32>
    %cst_24 = arith.constant dense<0.000000e+00> : vector<16x128xf32>
    %81 = tpu.matmul %80, %78, %cst_24 {dimension_numbers = #tpu.dot_dimension_numbers<[1], [0], [0], [1], [0, 0, 1, 1], [], []>} : vector<16x32xf32>, vector<32x128xf32>, vector<16x128xf32> -> vector<16x128xf32>
    %82 = vector.broadcast %38 : vector<16x1xf32> to vector<16x128xf32>
    %83 = arith.addf %81, %82 : vector<16x128xf32>
    %84 = arith.addf %0, %83 : vector<16x128xf32>
    %85 = vector.broadcast %34 : vector<1x128xf32> to vector<16x128xf32>
    %86 = arith.mulf %84, %85 : vector<16x128xf32>
    %c0_25 = arith.constant 0 : index
    %c4 = arith.constant 4 : index
    %87 = vector.load %arg5[%c0_25, %c4] : memref<32x27xf32, #tpu.memory_space<vmem>>, vector<16x1xf32>
    %c0_26 = arith.constant 0 : index
    %c5 = arith.constant 5 : index
    %88 = vector.load %arg5[%c0_26, %c5] : memref<32x27xf32, #tpu.memory_space<vmem>>, vector<16x1xf32>
    %c0_27 = arith.constant 0 : index
    %c6 = arith.constant 6 : index
    %89 = vector.load %arg5[%c0_27, %c6] : memref<32x27xf32, #tpu.memory_space<vmem>>, vector<32x1xf32>
    %c0_28 = arith.constant 0 : index
    %c7 = arith.constant 7 : index
    %90 = vector.load %arg5[%c0_28, %c7] : memref<32x27xf32, #tpu.memory_space<vmem>>, vector<16x1xf32>
    %cst_29 = arith.constant dense<0.000000e+00> : vector<128xf32>
    %91 = vector.multi_reduction <add>, %86, %cst_29 [0] : vector<16x128xf32> to vector<128xf32>
    %92 = vector.shape_cast %91 : vector<128xf32> to vector<1x128xf32>
    %cst_30 = arith.constant 1.600000e+01 : f32
    %93 = vector.broadcast %cst_30 : f32 to vector<1x128xf32>
    %94 = arith.divf %92, %93 : vector<1x128xf32>
    %95 = vector.broadcast %94 : vector<1x128xf32> to vector<16x128xf32>
    %96 = arith.subf %86, %95 : vector<16x128xf32>
    %97 = arith.mulf %96, %96 : vector<16x128xf32>
    %cst_31 = arith.constant dense<0.000000e+00> : vector<128xf32>
    %98 = vector.multi_reduction <add>, %97, %cst_31 [0] : vector<16x128xf32> to vector<128xf32>
    %99 = vector.shape_cast %98 : vector<128xf32> to vector<1x128xf32>
    %cst_32 = arith.constant 1.600000e+01 : f32
    %100 = vector.broadcast %cst_32 : f32 to vector<1x128xf32>
    %101 = arith.divf %99, %100 : vector<1x128xf32>
    %cst_33 = arith.constant 9.99999974E-6 : f32
    %102 = vector.broadcast %cst_33 : f32 to vector<1x128xf32>
    %103 = arith.addf %101, %102 : vector<1x128xf32>
    %104 = math.rsqrt %103 : vector<1x128xf32>
    %105 = vector.broadcast %104 : vector<1x128xf32> to vector<16x128xf32>
    %106 = arith.mulf %96, %105 : vector<16x128xf32>
    %107 = vector.broadcast %87 : vector<16x1xf32> to vector<16x128xf32>
    %108 = arith.mulf %106, %107 : vector<16x128xf32>
    %109 = vector.broadcast %88 : vector<16x1xf32> to vector<16x128xf32>
    %110 = arith.addf %108, %109 : vector<16x128xf32>
    %c1_34 = arith.constant 1 : index
    %c0_35 = arith.constant 0 : index
    %c0_36 = arith.constant 0 : index
    %111 = vector.load %arg2[%c1_34, %c0_35, %c0_36] : memref<6x32x48xf32, #tpu.memory_space<vmem>>, vector<1x32x48xf32>
    %112 = vector.shape_cast %111 : vector<1x32x48xf32> to vector<32x48xf32>
    %c1_i32_37 = arith.constant 1 : i32
    %113 = tpu.dynamic_rotate %110 by %c1_i32_37 dim 1 : vector<16x128xf32>, i32 -> vector<16x128xf32>
    %114 = vector.broadcast %7 : vector<1x128xf32> to vector<16x128xf32>
    %115 = arith.mulf %113, %114 : vector<16x128xf32>
    %c127_i32_38 = arith.constant 127 : i32
    %116 = tpu.dynamic_rotate %110 by %c127_i32_38 dim 1 : vector<16x128xf32>, i32 -> vector<16x128xf32>
    %117 = vector.broadcast %11 : vector<1x128xf32> to vector<16x128xf32>
    %118 = arith.mulf %116, %117 : vector<16x128xf32>
    %119 = tpu.concatenate %115, %110, %118 in 0 : vector<16x128xf32>, vector<16x128xf32>, vector<16x128xf32> -> vector<48x128xf32>
    %cst_39 = arith.constant dense<0.000000e+00> : vector<32x128xf32>
    %120 = tpu.matmul %112, %119, %cst_39 {dimension_numbers = #tpu.dot_dimension_numbers<[1], [0], [0], [1], [0, 0, 1, 1], [], []>} : vector<32x48xf32>, vector<48x128xf32>, vector<32x128xf32> -> vector<32x128xf32>
    %121 = vector.broadcast %89 : vector<32x1xf32> to vector<32x128xf32>
    %122 = arith.addf %120, %121 : vector<32x128xf32>
    %cst_40 = arith.constant 5.000000e-01 : f32
    %123 = vector.broadcast %cst_40 : f32 to vector<32x128xf32>
    %124 = arith.mulf %123, %122 : vector<32x128xf32>
    %cst_41 = arith.constant 0.707106769 : f32
    %125 = vector.broadcast %cst_41 : f32 to vector<32x128xf32>
    %126 = arith.mulf %122, %125 : vector<32x128xf32>
    %127 = math.erf %126 : vector<32x128xf32>
    %cst_42 = arith.constant 1.000000e+00 : f32
    %128 = vector.broadcast %cst_42 : f32 to vector<32x128xf32>
    %129 = arith.addf %128, %127 : vector<32x128xf32>
    %130 = arith.mulf %124, %129 : vector<32x128xf32>
    %c1_43 = arith.constant 1 : index
    %c0_44 = arith.constant 0 : index
    %c0_45 = arith.constant 0 : index
    %131 = vector.load %arg3[%c1_43, %c0_44, %c0_45] : memref<6x16x32xf32, #tpu.memory_space<vmem>>, vector<1x16x32xf32>
    %132 = vector.shape_cast %131 : vector<1x16x32xf32> to vector<16x32xf32>
    %cst_46 = arith.constant dense<0.000000e+00> : vector<16x128xf32>
    %133 = tpu.matmul %132, %130, %cst_46 {dimension_numbers = #tpu.dot_dimension_numbers<[1], [0], [0], [1], [0, 0, 1, 1], [], []>} : vector<16x32xf32>, vector<32x128xf32>, vector<16x128xf32> -> vector<16x128xf32>
    %134 = vector.broadcast %90 : vector<16x1xf32> to vector<16x128xf32>
    %135 = arith.addf %133, %134 : vector<16x128xf32>
    %136 = arith.addf %86, %135 : vector<16x128xf32>
    %137 = vector.broadcast %34 : vector<1x128xf32> to vector<16x128xf32>
    %138 = arith.mulf %136, %137 : vector<16x128xf32>
    %c0_47 = arith.constant 0 : index
    %c8 = arith.constant 8 : index
    %139 = vector.load %arg5[%c0_47, %c8] : memref<32x27xf32, #tpu.memory_space<vmem>>, vector<16x1xf32>
    %c0_48 = arith.constant 0 : index
    %c9 = arith.constant 9 : index
    %140 = vector.load %arg5[%c0_48, %c9] : memref<32x27xf32, #tpu.memory_space<vmem>>, vector<16x1xf32>
    %c0_49 = arith.constant 0 : index
    %c10 = arith.constant 10 : index
    %141 = vector.load %arg5[%c0_49, %c10] : memref<32x27xf32, #tpu.memory_space<vmem>>, vector<32x1xf32>
    %c0_50 = arith.constant 0 : index
    %c11 = arith.constant 11 : index
    %142 = vector.load %arg5[%c0_50, %c11] : memref<32x27xf32, #tpu.memory_space<vmem>>, vector<16x1xf32>
    %cst_51 = arith.constant dense<0.000000e+00> : vector<128xf32>
    %143 = vector.multi_reduction <add>, %138, %cst_51 [0] : vector<16x128xf32> to vector<128xf32>
    %144 = vector.shape_cast %143 : vector<128xf32> to vector<1x128xf32>
    %cst_52 = arith.constant 1.600000e+01 : f32
    %145 = vector.broadcast %cst_52 : f32 to vector<1x128xf32>
    %146 = arith.divf %144, %145 : vector<1x128xf32>
    %147 = vector.broadcast %146 : vector<1x128xf32> to vector<16x128xf32>
    %148 = arith.subf %138, %147 : vector<16x128xf32>
    %149 = arith.mulf %148, %148 : vector<16x128xf32>
    %cst_53 = arith.constant dense<0.000000e+00> : vector<128xf32>
    %150 = vector.multi_reduction <add>, %149, %cst_53 [0] : vector<16x128xf32> to vector<128xf32>
    %151 = vector.shape_cast %150 : vector<128xf32> to vector<1x128xf32>
    %cst_54 = arith.constant 1.600000e+01 : f32
    %152 = vector.broadcast %cst_54 : f32 to vector<1x128xf32>
    %153 = arith.divf %151, %152 : vector<1x128xf32>
    %cst_55 = arith.constant 9.99999974E-6 : f32
    %154 = vector.broadcast %cst_55 : f32 to vector<1x128xf32>
    %155 = arith.addf %153, %154 : vector<1x128xf32>
    %156 = math.rsqrt %155 : vector<1x128xf32>
    %157 = vector.broadcast %156 : vector<1x128xf32> to vector<16x128xf32>
    %158 = arith.mulf %148, %157 : vector<16x128xf32>
    %159 = vector.broadcast %139 : vector<16x1xf32> to vector<16x128xf32>
    %160 = arith.mulf %158, %159 : vector<16x128xf32>
    %161 = vector.broadcast %140 : vector<16x1xf32> to vector<16x128xf32>
    %162 = arith.addf %160, %161 : vector<16x128xf32>
    %c2_56 = arith.constant 2 : index
    %c0_57 = arith.constant 0 : index
    %c0_58 = arith.constant 0 : index
    %163 = vector.load %arg2[%c2_56, %c0_57, %c0_58] : memref<6x32x48xf32, #tpu.memory_space<vmem>>, vector<1x32x48xf32>
    %164 = vector.shape_cast %163 : vector<1x32x48xf32> to vector<32x48xf32>
    %c2_i32_59 = arith.constant 2 : i32
    %165 = tpu.dynamic_rotate %162 by %c2_i32_59 dim 1 : vector<16x128xf32>, i32 -> vector<16x128xf32>
    %166 = vector.broadcast %15 : vector<1x128xf32> to vector<16x128xf32>
    %167 = arith.mulf %165, %166 : vector<16x128xf32>
    %c126_i32 = arith.constant 126 : i32
    %168 = tpu.dynamic_rotate %162 by %c126_i32 dim 1 : vector<16x128xf32>, i32 -> vector<16x128xf32>
    %169 = vector.broadcast %19 : vector<1x128xf32> to vector<16x128xf32>
    %170 = arith.mulf %168, %169 : vector<16x128xf32>
    %171 = tpu.concatenate %167, %162, %170 in 0 : vector<16x128xf32>, vector<16x128xf32>, vector<16x128xf32> -> vector<48x128xf32>
    %cst_60 = arith.constant dense<0.000000e+00> : vector<32x128xf32>
    %172 = tpu.matmul %164, %171, %cst_60 {dimension_numbers = #tpu.dot_dimension_numbers<[1], [0], [0], [1], [0, 0, 1, 1], [], []>} : vector<32x48xf32>, vector<48x128xf32>, vector<32x128xf32> -> vector<32x128xf32>
    %173 = vector.broadcast %141 : vector<32x1xf32> to vector<32x128xf32>
    %174 = arith.addf %172, %173 : vector<32x128xf32>
    %cst_61 = arith.constant 5.000000e-01 : f32
    %175 = vector.broadcast %cst_61 : f32 to vector<32x128xf32>
    %176 = arith.mulf %175, %174 : vector<32x128xf32>
    %cst_62 = arith.constant 0.707106769 : f32
    %177 = vector.broadcast %cst_62 : f32 to vector<32x128xf32>
    %178 = arith.mulf %174, %177 : vector<32x128xf32>
    %179 = math.erf %178 : vector<32x128xf32>
    %cst_63 = arith.constant 1.000000e+00 : f32
    %180 = vector.broadcast %cst_63 : f32 to vector<32x128xf32>
    %181 = arith.addf %180, %179 : vector<32x128xf32>
    %182 = arith.mulf %176, %181 : vector<32x128xf32>
    %c2_64 = arith.constant 2 : index
    %c0_65 = arith.constant 0 : index
    %c0_66 = arith.constant 0 : index
    %183 = vector.load %arg3[%c2_64, %c0_65, %c0_66] : memref<6x16x32xf32, #tpu.memory_space<vmem>>, vector<1x16x32xf32>
    %184 = vector.shape_cast %183 : vector<1x16x32xf32> to vector<16x32xf32>
    %cst_67 = arith.constant dense<0.000000e+00> : vector<16x128xf32>
    %185 = tpu.matmul %184, %182, %cst_67 {dimension_numbers = #tpu.dot_dimension_numbers<[1], [0], [0], [1], [0, 0, 1, 1], [], []>} : vector<16x32xf32>, vector<32x128xf32>, vector<16x128xf32> -> vector<16x128xf32>
    %186 = vector.broadcast %142 : vector<16x1xf32> to vector<16x128xf32>
    %187 = arith.addf %185, %186 : vector<16x128xf32>
    %188 = arith.addf %138, %187 : vector<16x128xf32>
    %189 = vector.broadcast %34 : vector<1x128xf32> to vector<16x128xf32>
    %190 = arith.mulf %188, %189 : vector<16x128xf32>
    %c0_68 = arith.constant 0 : index
    %c12 = arith.constant 12 : index
    %191 = vector.load %arg5[%c0_68, %c12] : memref<32x27xf32, #tpu.memory_space<vmem>>, vector<16x1xf32>
    %c0_69 = arith.constant 0 : index
    %c13 = arith.constant 13 : index
    %192 = vector.load %arg5[%c0_69, %c13] : memref<32x27xf32, #tpu.memory_space<vmem>>, vector<16x1xf32>
    %c0_70 = arith.constant 0 : index
    %c14 = arith.constant 14 : index
    %193 = vector.load %arg5[%c0_70, %c14] : memref<32x27xf32, #tpu.memory_space<vmem>>, vector<32x1xf32>
    %c0_71 = arith.constant 0 : index
    %c15 = arith.constant 15 : index
    %194 = vector.load %arg5[%c0_71, %c15] : memref<32x27xf32, #tpu.memory_space<vmem>>, vector<16x1xf32>
    %cst_72 = arith.constant dense<0.000000e+00> : vector<128xf32>
    %195 = vector.multi_reduction <add>, %190, %cst_72 [0] : vector<16x128xf32> to vector<128xf32>
    %196 = vector.shape_cast %195 : vector<128xf32> to vector<1x128xf32>
    %cst_73 = arith.constant 1.600000e+01 : f32
    %197 = vector.broadcast %cst_73 : f32 to vector<1x128xf32>
    %198 = arith.divf %196, %197 : vector<1x128xf32>
    %199 = vector.broadcast %198 : vector<1x128xf32> to vector<16x128xf32>
    %200 = arith.subf %190, %199 : vector<16x128xf32>
    %201 = arith.mulf %200, %200 : vector<16x128xf32>
    %cst_74 = arith.constant dense<0.000000e+00> : vector<128xf32>
    %202 = vector.multi_reduction <add>, %201, %cst_74 [0] : vector<16x128xf32> to vector<128xf32>
    %203 = vector.shape_cast %202 : vector<128xf32> to vector<1x128xf32>
    %cst_75 = arith.constant 1.600000e+01 : f32
    %204 = vector.broadcast %cst_75 : f32 to vector<1x128xf32>
    %205 = arith.divf %203, %204 : vector<1x128xf32>
    %cst_76 = arith.constant 9.99999974E-6 : f32
    %206 = vector.broadcast %cst_76 : f32 to vector<1x128xf32>
    %207 = arith.addf %205, %206 : vector<1x128xf32>
    %208 = math.rsqrt %207 : vector<1x128xf32>
    %209 = vector.broadcast %208 : vector<1x128xf32> to vector<16x128xf32>
    %210 = arith.mulf %200, %209 : vector<16x128xf32>
    %211 = vector.broadcast %191 : vector<16x1xf32> to vector<16x128xf32>
    %212 = arith.mulf %210, %211 : vector<16x128xf32>
    %213 = vector.broadcast %192 : vector<16x1xf32> to vector<16x128xf32>
    %214 = arith.addf %212, %213 : vector<16x128xf32>
    %c3_77 = arith.constant 3 : index
    %c0_78 = arith.constant 0 : index
    %c0_79 = arith.constant 0 : index
    %215 = vector.load %arg2[%c3_77, %c0_78, %c0_79] : memref<6x32x48xf32, #tpu.memory_space<vmem>>, vector<1x32x48xf32>
    %216 = vector.shape_cast %215 : vector<1x32x48xf32> to vector<32x48xf32>
    %c2_i32_80 = arith.constant 2 : i32
    %217 = tpu.dynamic_rotate %214 by %c2_i32_80 dim 1 : vector<16x128xf32>, i32 -> vector<16x128xf32>
    %218 = vector.broadcast %15 : vector<1x128xf32> to vector<16x128xf32>
    %219 = arith.mulf %217, %218 : vector<16x128xf32>
    %c126_i32_81 = arith.constant 126 : i32
    %220 = tpu.dynamic_rotate %214 by %c126_i32_81 dim 1 : vector<16x128xf32>, i32 -> vector<16x128xf32>
    %221 = vector.broadcast %19 : vector<1x128xf32> to vector<16x128xf32>
    %222 = arith.mulf %220, %221 : vector<16x128xf32>
    %223 = tpu.concatenate %219, %214, %222 in 0 : vector<16x128xf32>, vector<16x128xf32>, vector<16x128xf32> -> vector<48x128xf32>
    %cst_82 = arith.constant dense<0.000000e+00> : vector<32x128xf32>
    %224 = tpu.matmul %216, %223, %cst_82 {dimension_numbers = #tpu.dot_dimension_numbers<[1], [0], [0], [1], [0, 0, 1, 1], [], []>} : vector<32x48xf32>, vector<48x128xf32>, vector<32x128xf32> -> vector<32x128xf32>
    %225 = vector.broadcast %193 : vector<32x1xf32> to vector<32x128xf32>
    %226 = arith.addf %224, %225 : vector<32x128xf32>
    %cst_83 = arith.constant 5.000000e-01 : f32
    %227 = vector.broadcast %cst_83 : f32 to vector<32x128xf32>
    %228 = arith.mulf %227, %226 : vector<32x128xf32>
    %cst_84 = arith.constant 0.707106769 : f32
    %229 = vector.broadcast %cst_84 : f32 to vector<32x128xf32>
    %230 = arith.mulf %226, %229 : vector<32x128xf32>
    %231 = math.erf %230 : vector<32x128xf32>
    %cst_85 = arith.constant 1.000000e+00 : f32
    %232 = vector.broadcast %cst_85 : f32 to vector<32x128xf32>
    %233 = arith.addf %232, %231 : vector<32x128xf32>
    %234 = arith.mulf %228, %233 : vector<32x128xf32>
    %c3_86 = arith.constant 3 : index
    %c0_87 = arith.constant 0 : index
    %c0_88 = arith.constant 0 : index
    %235 = vector.load %arg3[%c3_86, %c0_87, %c0_88] : memref<6x16x32xf32, #tpu.memory_space<vmem>>, vector<1x16x32xf32>
    %236 = vector.shape_cast %235 : vector<1x16x32xf32> to vector<16x32xf32>
    %cst_89 = arith.constant dense<0.000000e+00> : vector<16x128xf32>
    %237 = tpu.matmul %236, %234, %cst_89 {dimension_numbers = #tpu.dot_dimension_numbers<[1], [0], [0], [1], [0, 0, 1, 1], [], []>} : vector<16x32xf32>, vector<32x128xf32>, vector<16x128xf32> -> vector<16x128xf32>
    %238 = vector.broadcast %194 : vector<16x1xf32> to vector<16x128xf32>
    %239 = arith.addf %237, %238 : vector<16x128xf32>
    %240 = arith.addf %190, %239 : vector<16x128xf32>
    %241 = vector.broadcast %34 : vector<1x128xf32> to vector<16x128xf32>
    %242 = arith.mulf %240, %241 : vector<16x128xf32>
    %c0_90 = arith.constant 0 : index
    %c16 = arith.constant 16 : index
    %243 = vector.load %arg5[%c0_90, %c16] : memref<32x27xf32, #tpu.memory_space<vmem>>, vector<16x1xf32>
    %c0_91 = arith.constant 0 : index
    %c17 = arith.constant 17 : index
    %244 = vector.load %arg5[%c0_91, %c17] : memref<32x27xf32, #tpu.memory_space<vmem>>, vector<16x1xf32>
    %c0_92 = arith.constant 0 : index
    %c18 = arith.constant 18 : index
    %245 = vector.load %arg5[%c0_92, %c18] : memref<32x27xf32, #tpu.memory_space<vmem>>, vector<32x1xf32>
    %c0_93 = arith.constant 0 : index
    %c19 = arith.constant 19 : index
    %246 = vector.load %arg5[%c0_93, %c19] : memref<32x27xf32, #tpu.memory_space<vmem>>, vector<16x1xf32>
    %cst_94 = arith.constant dense<0.000000e+00> : vector<128xf32>
    %247 = vector.multi_reduction <add>, %242, %cst_94 [0] : vector<16x128xf32> to vector<128xf32>
    %248 = vector.shape_cast %247 : vector<128xf32> to vector<1x128xf32>
    %cst_95 = arith.constant 1.600000e+01 : f32
    %249 = vector.broadcast %cst_95 : f32 to vector<1x128xf32>
    %250 = arith.divf %248, %249 : vector<1x128xf32>
    %251 = vector.broadcast %250 : vector<1x128xf32> to vector<16x128xf32>
    %252 = arith.subf %242, %251 : vector<16x128xf32>
    %253 = arith.mulf %252, %252 : vector<16x128xf32>
    %cst_96 = arith.constant dense<0.000000e+00> : vector<128xf32>
    %254 = vector.multi_reduction <add>, %253, %cst_96 [0] : vector<16x128xf32> to vector<128xf32>
    %255 = vector.shape_cast %254 : vector<128xf32> to vector<1x128xf32>
    %cst_97 = arith.constant 1.600000e+01 : f32
    %256 = vector.broadcast %cst_97 : f32 to vector<1x128xf32>
    %257 = arith.divf %255, %256 : vector<1x128xf32>
    %cst_98 = arith.constant 9.99999974E-6 : f32
    %258 = vector.broadcast %cst_98 : f32 to vector<1x128xf32>
    %259 = arith.addf %257, %258 : vector<1x128xf32>
    %260 = math.rsqrt %259 : vector<1x128xf32>
    %261 = vector.broadcast %260 : vector<1x128xf32> to vector<16x128xf32>
    %262 = arith.mulf %252, %261 : vector<16x128xf32>
    %263 = vector.broadcast %243 : vector<16x1xf32> to vector<16x128xf32>
    %264 = arith.mulf %262, %263 : vector<16x128xf32>
    %265 = vector.broadcast %244 : vector<16x1xf32> to vector<16x128xf32>
    %266 = arith.addf %264, %265 : vector<16x128xf32>
    %c4_99 = arith.constant 4 : index
    %c0_100 = arith.constant 0 : index
    %c0_101 = arith.constant 0 : index
    %267 = vector.load %arg2[%c4_99, %c0_100, %c0_101] : memref<6x32x48xf32, #tpu.memory_space<vmem>>, vector<1x32x48xf32>
    %268 = vector.shape_cast %267 : vector<1x32x48xf32> to vector<32x48xf32>
    %c4_i32_102 = arith.constant 4 : i32
    %269 = tpu.dynamic_rotate %266 by %c4_i32_102 dim 1 : vector<16x128xf32>, i32 -> vector<16x128xf32>
    %270 = vector.broadcast %23 : vector<1x128xf32> to vector<16x128xf32>
    %271 = arith.mulf %269, %270 : vector<16x128xf32>
    %c124_i32 = arith.constant 124 : i32
    %272 = tpu.dynamic_rotate %266 by %c124_i32 dim 1 : vector<16x128xf32>, i32 -> vector<16x128xf32>
    %273 = vector.broadcast %27 : vector<1x128xf32> to vector<16x128xf32>
    %274 = arith.mulf %272, %273 : vector<16x128xf32>
    %275 = tpu.concatenate %271, %266, %274 in 0 : vector<16x128xf32>, vector<16x128xf32>, vector<16x128xf32> -> vector<48x128xf32>
    %cst_103 = arith.constant dense<0.000000e+00> : vector<32x128xf32>
    %276 = tpu.matmul %268, %275, %cst_103 {dimension_numbers = #tpu.dot_dimension_numbers<[1], [0], [0], [1], [0, 0, 1, 1], [], []>} : vector<32x48xf32>, vector<48x128xf32>, vector<32x128xf32> -> vector<32x128xf32>
    %277 = vector.broadcast %245 : vector<32x1xf32> to vector<32x128xf32>
    %278 = arith.addf %276, %277 : vector<32x128xf32>
    %cst_104 = arith.constant 5.000000e-01 : f32
    %279 = vector.broadcast %cst_104 : f32 to vector<32x128xf32>
    %280 = arith.mulf %279, %278 : vector<32x128xf32>
    %cst_105 = arith.constant 0.707106769 : f32
    %281 = vector.broadcast %cst_105 : f32 to vector<32x128xf32>
    %282 = arith.mulf %278, %281 : vector<32x128xf32>
    %283 = math.erf %282 : vector<32x128xf32>
    %cst_106 = arith.constant 1.000000e+00 : f32
    %284 = vector.broadcast %cst_106 : f32 to vector<32x128xf32>
    %285 = arith.addf %284, %283 : vector<32x128xf32>
    %286 = arith.mulf %280, %285 : vector<32x128xf32>
    %c4_107 = arith.constant 4 : index
    %c0_108 = arith.constant 0 : index
    %c0_109 = arith.constant 0 : index
    %287 = vector.load %arg3[%c4_107, %c0_108, %c0_109] : memref<6x16x32xf32, #tpu.memory_space<vmem>>, vector<1x16x32xf32>
    %288 = vector.shape_cast %287 : vector<1x16x32xf32> to vector<16x32xf32>
    %cst_110 = arith.constant dense<0.000000e+00> : vector<16x128xf32>
    %289 = tpu.matmul %288, %286, %cst_110 {dimension_numbers = #tpu.dot_dimension_numbers<[1], [0], [0], [1], [0, 0, 1, 1], [], []>} : vector<16x32xf32>, vector<32x128xf32>, vector<16x128xf32> -> vector<16x128xf32>
    %290 = vector.broadcast %246 : vector<16x1xf32> to vector<16x128xf32>
    %291 = arith.addf %289, %290 : vector<16x128xf32>
    %292 = arith.addf %242, %291 : vector<16x128xf32>
    %293 = vector.broadcast %34 : vector<1x128xf32> to vector<16x128xf32>
    %294 = arith.mulf %292, %293 : vector<16x128xf32>
    %c0_111 = arith.constant 0 : index
    %c20 = arith.constant 20 : index
    %295 = vector.load %arg5[%c0_111, %c20] : memref<32x27xf32, #tpu.memory_space<vmem>>, vector<16x1xf32>
    %c0_112 = arith.constant 0 : index
    %c21 = arith.constant 21 : index
    %296 = vector.load %arg5[%c0_112, %c21] : memref<32x27xf32, #tpu.memory_space<vmem>>, vector<16x1xf32>
    %c0_113 = arith.constant 0 : index
    %c22 = arith.constant 22 : index
    %297 = vector.load %arg5[%c0_113, %c22] : memref<32x27xf32, #tpu.memory_space<vmem>>, vector<32x1xf32>
    %c0_114 = arith.constant 0 : index
    %c23 = arith.constant 23 : index
    %298 = vector.load %arg5[%c0_114, %c23] : memref<32x27xf32, #tpu.memory_space<vmem>>, vector<16x1xf32>
    %cst_115 = arith.constant dense<0.000000e+00> : vector<128xf32>
    %299 = vector.multi_reduction <add>, %294, %cst_115 [0] : vector<16x128xf32> to vector<128xf32>
    %300 = vector.shape_cast %299 : vector<128xf32> to vector<1x128xf32>
    %cst_116 = arith.constant 1.600000e+01 : f32
    %301 = vector.broadcast %cst_116 : f32 to vector<1x128xf32>
    %302 = arith.divf %300, %301 : vector<1x128xf32>
    %303 = vector.broadcast %302 : vector<1x128xf32> to vector<16x128xf32>
    %304 = arith.subf %294, %303 : vector<16x128xf32>
    %305 = arith.mulf %304, %304 : vector<16x128xf32>
    %cst_117 = arith.constant dense<0.000000e+00> : vector<128xf32>
    %306 = vector.multi_reduction <add>, %305, %cst_117 [0] : vector<16x128xf32> to vector<128xf32>
    %307 = vector.shape_cast %306 : vector<128xf32> to vector<1x128xf32>
    %cst_118 = arith.constant 1.600000e+01 : f32
    %308 = vector.broadcast %cst_118 : f32 to vector<1x128xf32>
    %309 = arith.divf %307, %308 : vector<1x128xf32>
    %cst_119 = arith.constant 9.99999974E-6 : f32
    %310 = vector.broadcast %cst_119 : f32 to vector<1x128xf32>
    %311 = arith.addf %309, %310 : vector<1x128xf32>
    %312 = math.rsqrt %311 : vector<1x128xf32>
    %313 = vector.broadcast %312 : vector<1x128xf32> to vector<16x128xf32>
    %314 = arith.mulf %304, %313 : vector<16x128xf32>
    %315 = vector.broadcast %295 : vector<16x1xf32> to vector<16x128xf32>
    %316 = arith.mulf %314, %315 : vector<16x128xf32>
    %317 = vector.broadcast %296 : vector<16x1xf32> to vector<16x128xf32>
    %318 = arith.addf %316, %317 : vector<16x128xf32>
    %c5_120 = arith.constant 5 : index
    %c0_121 = arith.constant 0 : index
    %c0_122 = arith.constant 0 : index
    %319 = vector.load %arg2[%c5_120, %c0_121, %c0_122] : memref<6x32x48xf32, #tpu.memory_space<vmem>>, vector<1x32x48xf32>
    %320 = vector.shape_cast %319 : vector<1x32x48xf32> to vector<32x48xf32>
    %c4_i32_123 = arith.constant 4 : i32
    %321 = tpu.dynamic_rotate %318 by %c4_i32_123 dim 1 : vector<16x128xf32>, i32 -> vector<16x128xf32>
    %322 = vector.broadcast %23 : vector<1x128xf32> to vector<16x128xf32>
    %323 = arith.mulf %321, %322 : vector<16x128xf32>
    %c124_i32_124 = arith.constant 124 : i32
    %324 = tpu.dynamic_rotate %318 by %c124_i32_124 dim 1 : vector<16x128xf32>, i32 -> vector<16x128xf32>
    %325 = vector.broadcast %27 : vector<1x128xf32> to vector<16x128xf32>
    %326 = arith.mulf %324, %325 : vector<16x128xf32>
    %327 = tpu.concatenate %323, %318, %326 in 0 : vector<16x128xf32>, vector<16x128xf32>, vector<16x128xf32> -> vector<48x128xf32>
    %cst_125 = arith.constant dense<0.000000e+00> : vector<32x128xf32>
    %328 = tpu.matmul %320, %327, %cst_125 {dimension_numbers = #tpu.dot_dimension_numbers<[1], [0], [0], [1], [0, 0, 1, 1], [], []>} : vector<32x48xf32>, vector<48x128xf32>, vector<32x128xf32> -> vector<32x128xf32>
    %329 = vector.broadcast %297 : vector<32x1xf32> to vector<32x128xf32>
    %330 = arith.addf %328, %329 : vector<32x128xf32>
    %cst_126 = arith.constant 5.000000e-01 : f32
    %331 = vector.broadcast %cst_126 : f32 to vector<32x128xf32>
    %332 = arith.mulf %331, %330 : vector<32x128xf32>
    %cst_127 = arith.constant 0.707106769 : f32
    %333 = vector.broadcast %cst_127 : f32 to vector<32x128xf32>
    %334 = arith.mulf %330, %333 : vector<32x128xf32>
    %335 = math.erf %334 : vector<32x128xf32>
    %cst_128 = arith.constant 1.000000e+00 : f32
    %336 = vector.broadcast %cst_128 : f32 to vector<32x128xf32>
    %337 = arith.addf %336, %335 : vector<32x128xf32>
    %338 = arith.mulf %332, %337 : vector<32x128xf32>
    %c5_129 = arith.constant 5 : index
    %c0_130 = arith.constant 0 : index
    %c0_131 = arith.constant 0 : index
    %339 = vector.load %arg3[%c5_129, %c0_130, %c0_131] : memref<6x16x32xf32, #tpu.memory_space<vmem>>, vector<1x16x32xf32>
    %340 = vector.shape_cast %339 : vector<1x16x32xf32> to vector<16x32xf32>
    %cst_132 = arith.constant dense<0.000000e+00> : vector<16x128xf32>
    %341 = tpu.matmul %340, %338, %cst_132 {dimension_numbers = #tpu.dot_dimension_numbers<[1], [0], [0], [1], [0, 0, 1, 1], [], []>} : vector<16x32xf32>, vector<32x128xf32>, vector<16x128xf32> -> vector<16x128xf32>
    %342 = vector.broadcast %298 : vector<16x1xf32> to vector<16x128xf32>
    %343 = arith.addf %341, %342 : vector<16x128xf32>
    %344 = arith.addf %294, %343 : vector<16x128xf32>
    %345 = vector.broadcast %34 : vector<1x128xf32> to vector<16x128xf32>
    %346 = arith.mulf %344, %345 : vector<16x128xf32>
    %347 = vector.broadcast %34 : vector<1x128xf32> to vector<16x128xf32>
    %348 = arith.mulf %346, %347 : vector<16x128xf32>
    %c0_133 = arith.constant 0 : index
    %c24 = arith.constant 24 : index
    %349 = vector.load %arg5[%c0_133, %c24] : memref<32x27xf32, #tpu.memory_space<vmem>>, vector<16x1xf32>
    %c0_134 = arith.constant 0 : index
    %c25 = arith.constant 25 : index
    %350 = vector.load %arg5[%c0_134, %c25] : memref<32x27xf32, #tpu.memory_space<vmem>>, vector<16x1xf32>
    %cst_135 = arith.constant dense<0.000000e+00> : vector<128xf32>
    %351 = vector.multi_reduction <add>, %348, %cst_135 [0] : vector<16x128xf32> to vector<128xf32>
    %352 = vector.shape_cast %351 : vector<128xf32> to vector<1x128xf32>
    %cst_136 = arith.constant 1.600000e+01 : f32
    %353 = vector.broadcast %cst_136 : f32 to vector<1x128xf32>
    %354 = arith.divf %352, %353 : vector<1x128xf32>
    %355 = vector.broadcast %354 : vector<1x128xf32> to vector<16x128xf32>
    %356 = arith.subf %348, %355 : vector<16x128xf32>
    %357 = arith.mulf %356, %356 : vector<16x128xf32>
    %cst_137 = arith.constant dense<0.000000e+00> : vector<128xf32>
    %358 = vector.multi_reduction <add>, %357, %cst_137 [0] : vector<16x128xf32> to vector<128xf32>
    %359 = vector.shape_cast %358 : vector<128xf32> to vector<1x128xf32>
    %cst_138 = arith.constant 1.600000e+01 : f32
    %360 = vector.broadcast %cst_138 : f32 to vector<1x128xf32>
    %361 = arith.divf %359, %360 : vector<1x128xf32>
    %cst_139 = arith.constant 9.99999974E-6 : f32
    %362 = vector.broadcast %cst_139 : f32 to vector<1x128xf32>
    %363 = arith.addf %361, %362 : vector<1x128xf32>
    %364 = math.rsqrt %363 : vector<1x128xf32>
    %365 = vector.broadcast %364 : vector<1x128xf32> to vector<16x128xf32>
    %366 = arith.mulf %356, %365 : vector<16x128xf32>
    %367 = vector.broadcast %349 : vector<16x1xf32> to vector<16x128xf32>
    %368 = arith.mulf %366, %367 : vector<16x128xf32>
    %369 = vector.broadcast %350 : vector<16x1xf32> to vector<16x128xf32>
    %370 = arith.addf %368, %369 : vector<16x128xf32>
    %371 = vector.broadcast %34 : vector<1x128xf32> to vector<16x128xf32>
    %372 = arith.mulf %370, %371 : vector<16x128xf32>
    %c0_140 = arith.constant 0 : index
    %c0_141 = arith.constant 0 : index
    %373 = vector.load %arg4[%c0_140, %c0_141] : memref<16x48xf32, #tpu.memory_space<vmem>>, vector<16x48xf32>
    %c0_142 = arith.constant 0 : index
    %c26 = arith.constant 26 : index
    %374 = vector.load %arg5[%c0_142, %c26] : memref<32x27xf32, #tpu.memory_space<vmem>>, vector<16x1xf32>
    %c1_i32_143 = arith.constant 1 : i32
    %375 = tpu.dynamic_rotate %372 by %c1_i32_143 dim 1 : vector<16x128xf32>, i32 -> vector<16x128xf32>
    %376 = vector.broadcast %7 : vector<1x128xf32> to vector<16x128xf32>
    %377 = arith.mulf %375, %376 : vector<16x128xf32>
    %c127_i32_144 = arith.constant 127 : i32
    %378 = tpu.dynamic_rotate %372 by %c127_i32_144 dim 1 : vector<16x128xf32>, i32 -> vector<16x128xf32>
    %379 = vector.broadcast %11 : vector<1x128xf32> to vector<16x128xf32>
    %380 = arith.mulf %378, %379 : vector<16x128xf32>
    %381 = tpu.concatenate %377, %372, %380 in 0 : vector<16x128xf32>, vector<16x128xf32>, vector<16x128xf32> -> vector<48x128xf32>
    %cst_145 = arith.constant dense<0.000000e+00> : vector<16x128xf32>
    %382 = tpu.matmul %373, %381, %cst_145 {dimension_numbers = #tpu.dot_dimension_numbers<[1], [0], [0], [1], [0, 0, 1, 1], [], []>} : vector<16x48xf32>, vector<48x128xf32>, vector<16x128xf32> -> vector<16x128xf32>
    %383 = vector.broadcast %374 : vector<16x1xf32> to vector<16x128xf32>
    %384 = arith.addf %382, %383 : vector<16x128xf32>
    %385 = vector.broadcast %34 : vector<1x128xf32> to vector<16x128xf32>
    %386 = arith.mulf %384, %385 : vector<16x128xf32>
    %c0_146 = arith.constant 0 : index
    %c0_147 = arith.constant 0 : index
    %387 = vector.load %arg6[%c0_146, %c0_147] : memref<16x128xf32, #tpu.memory_space<vmem>>, vector<16x128xf32>
    tpu.vector_store %arg6[%c0_146, %c0_147], %386 {strides = array<i32>} : memref<16x128xf32, #tpu.memory_space<vmem>>, vector<16x128xf32>,
    return
  }
  func.func @transform_0(%arg0: i32) -> (i32, i32) {
    %c0_i32 = arith.constant 0 : i32
    %c0_i32_0 = arith.constant 0 : i32
    %c0_i32_1 = arith.constant 0 : i32
    return %c0_i32, %c0_i32_0 : i32, i32
  }
  func.func @transform_1(%arg0: i32) -> (i32, i32, i32) {
    %c0_i32 = arith.constant 0 : i32
    %c0_i32_0 = arith.constant 0 : i32
    %c0_i32_1 = arith.constant 0 : i32
    %c0_i32_2 = arith.constant 0 : i32
    return %c0_i32, %c0_i32_0, %c0_i32_1 : i32, i32, i32
  }
  func.func @transform_2(%arg0: i32) -> (i32, i32, i32) {
    %c0_i32 = arith.constant 0 : i32
    %c0_i32_0 = arith.constant 0 : i32
    %c0_i32_1 = arith.constant 0 : i32
    %c0_i32_2 = arith.constant 0 : i32
    return %c0_i32, %c0_i32_0, %c0_i32_1 : i32, i32, i32
  }
  func.func @transform_3(%arg0: i32) -> (i32, i32) {
    %c0_i32 = arith.constant 0 : i32
    %c0_i32_0 = arith.constant 0 : i32
    %c0_i32_1 = arith.constant 0 : i32
    return %c0_i32, %c0_i32_0 : i32, i32
  }
  func.func @transform_4(%arg0: i32) -> (i32, i32) {
    %c0_i32 = arith.constant 0 : i32
    %c0_i32_0 = arith.constant 0 : i32
    %c0_i32_1 = arith.constant 0 : i32
    return %c0_i32, %c0_i32_0 : i32, i32
  }
  func.func @transform_5(%arg0: i32) -> (i32, i32) {
    %c0_i32 = arith.constant 0 : i32
    %c0_i32_0 = arith.constant 0 : i32
    %c0_i32_1 = arith.constant 0 : i32
    return %c0_i32, %c0_i32_0 : i32, i32
  }
}

</mosaic_0001>

<llo_original>
// kernel: conv_blocks.1
$region0: #{conv_blocks.1}
  #allocation0 [shape = 'u32[]', space=smem, size = 0x4, offset = 0x4, fixed_abs, tag = 'smem constant byte address 0x4 - core index']
  #allocation1 [shape = 'u32[72,128]{1,0:T(1,128)}', space=vmem, size = 0x9000, scoped, tag = 'internal scratch']
  %s0 = inlined_call_operand.vmem [shape: f32[16,128], index: 0, kind: input, shape index: {}]
  %s1 = inlined_call_operand.vmem [shape: f32[6,32,48], index: 1, kind: input, shape index: {}]
  %s2 = inlined_call_operand.vmem [shape: f32[6,16,32], index: 2, kind: input, shape index: {}]
  %s3 = inlined_call_operand.vmem [shape: f32[16,48], index: 3, kind: input, shape index: {}]
  %s4 = inlined_call_operand.vmem [shape: f32[32,27], index: 4, kind: input, shape index: {}]
  %s5 = inlined_call_operand.vmem [shape: f32[16,128], index: 5, kind: output, shape index: {}]
  %s6 = sld [smem:[#allocation0]]
  $region30: #{conv_blocks.1} parent=0
    _
  %s8 = ssub.s32 1, %s6
  %s9 = scalar_select 0, %s8, %s6
  // Predicated region
  $region2: #{conv_blocks.1} parent=0 // pred_check
    _
  $region3: #{conv_blocks.1} parent=0 // pred_check_branch
    %11 = sbr.rel (0) target = $region5
  $region4: #{conv_blocks.1} parent=0 // pred_region
    _
  $region5: #{conv_blocks.1} parent=0 // pred_fallthru
    _
  // Predicated region
  $region6: #{conv_blocks.1} parent=0 // pred_check
    _
  $region7: #{conv_blocks.1} parent=0 // pred_check_branch
    %13 = sbr.rel (0) target = $region9
  $region8: #{conv_blocks.1} parent=0 // pred_region
    _
  $region9: #{conv_blocks.1} parent=0 // pred_fallthru
    _
  // Predicated region
  $region10: #{conv_blocks.1} parent=0 // pred_check
    _
  $region11: #{conv_blocks.1} parent=0 // pred_check_branch
    %15 = sbr.rel (0) target = $region13
  $region12: #{conv_blocks.1} parent=0 // pred_region
    _
  $region13: #{conv_blocks.1} parent=0 // pred_fallthru
    _
  // Predicated region
  $region14: #{conv_blocks.1} parent=0 // pred_check
    _
  $region15: #{conv_blocks.1} parent=0 // pred_check_branch
    %17 = sbr.rel (0) target = $region17
  $region16: #{conv_blocks.1} parent=0 // pred_region
    _
  $region17: #{conv_blocks.1} parent=0 // pred_fallthru
    _
  // Predicated region
  $region18: #{conv_blocks.1} parent=0 // pred_check
    _
  $region19: #{conv_blocks.1} parent=0 // pred_check_branch
    %19 = sbr.rel (0) target = $region21
  $region20: #{conv_blocks.1} parent=0 // pred_region
    _
  $region21: #{conv_blocks.1} parent=0 // pred_fallthru
    _
  %v20 = vld [vmem:[%s0] sm:$0xff]
  %v21 = vld [vmem:[%s0 + $0x8] sm:$0xff]
  %v22 = vlaneseq
  %v23 = vand.u32 %v22, 127
  %v24 = vand.u32 %v23, 63
  %vm25 = vcmp.ge.s32.totalorder %v24, 1
  %v26 = vsel %vm25, 1, 0
  %v27 = vcvt.s32.f32 %v26
  %vm28 = vcmp.lt.s32.totalorder %v24, 63
  %v29 = vsel %vm28, 1, 0
  %v30 = vcvt.s32.f32 %v29
  %vm31 = vcmp.ge.s32.totalorder %v24, 2
  %v32 = vsel %vm31, 1, 0
  %v33 = vcvt.s32.f32 %v32
  %vm34 = vcmp.lt.s32.totalorder %v24, 62
  %v35 = vsel %vm34, 1, 0
  %v36 = vcvt.s32.f32 %v35
  %vm37 = vcmp.ge.s32.totalorder %v24, 4
  %v38 = vsel %vm37, 1, 0
  %v39 = vcvt.s32.f32 %v38
  %vm40 = vcmp.lt.s32.totalorder %v24, 60
  %v41 = vsel %vm40, 1, 0
  %v42 = vcvt.s32.f32 %v41
  %v43 = vand.u32 2147483647, %v20
  %v44 = vand.u32 2147483647, %v21
  %v45 = vadd.f32 %v43, %v44
  %v46 = vrot.slane %v45, 4
  %v47 = vadd.f32 %v45, %v46
  %v48 = vrot.slane %v47, 2
  %v49 = vadd.f32 %v47, %v48
  %v50 = vrot.slane %v49, 1
  %v51 = vadd.f32 %v49, %v50
  %vm52 = vcmp.gt.f32.partialorder %v51, 0.0
  %v53 = vsel %vm52, 1, 0
  %v54 = vcvt.s32.f32 %v53
  %v55 = vld [vmem:[%s4] sm:$0xff]
  %v56 = vld [vmem:[%s4 + $0x8] sm:$0xff]
  %v57 = vld [vmem:[%s4 + $0x10] sm:$0xff]
  %v58 = vld [vmem:[%s4 + $0x18] sm:$0xff]
  %v59 = vadd.f32 %v20, %v21
  %v60 = vrot.slane %v59, 4
  %v61 = vadd.f32 %v59, %v60
  %v62 = vrot.slane %v61, 2
  %v63 = vadd.f32 %v61, %v62
  %v64 = vrot.slane %v63, 1
  %v65 = vadd.f32 %v63, %v64
  %v66 = vrcp.pop 16.0
  %v67 = vmul.f32 16.0, %v66
  %v68 = vsub.f32 1.0, %v67
  %v69 = vmul.f32 %v66, %v68
  %v70 = vadd.f32 %v66, %v69
  %vm71 = vweird.f32 %v66
  %v72 = vsel %vm71, %v66, %v70
  %v73 = vmul.f32 %v65, %v72
  %v74 = vsub.f32 %v20, %v73
  %v75 = vsub.f32 %v21, %v73
  %v76 = vmul.f32 %v74, %v74
  %v77 = vmul.f32 %v75, %v75
  %v78 = vadd.f32 %v76, %v77
  %v79 = vrot.slane %v78, 4
  %v80 = vadd.f32 %v78, %v79
  %v81 = vrot.slane %v80, 2
  %v82 = vadd.f32 %v80, %v81
  %v83 = vrot.slane %v82, 1
  %v84 = vadd.f32 %v82, %v83
  %v85 = vmul.f32 %v84, %v72
  %v86 = vadd.f32 %v85, 1e-05
  %v87 = vrsqrt.pop %v86
  %v88 = vmul.f32 %v87, %v86
  %v89 = vmul.f32 %v88, %v87
  %v90 = vmul.f32 0.5, %v89
  %v91 = vsub.f32 1.5, %v90
  %v92 = vmul.f32 %v87, %v91
  %vm93 = vweird.f32 %v86
  %vm94 = vweird.f32 %v87
  %vm95 = vmor %vm93, %vm94
  %v96 = vsel %vm95, %v87, %v92
  %v97 = vmul.f32 %v74, %v96
  %v98 = vmul.f32 %v75, %v96
  %100 = vset.pattern.permute.xlu0 0
  %101 = vperm.xlu0 %100, %v55
  %v102 = vpop.permute.xlu0 %101
  %105 = vset.pattern.permute.xlu0 0
  %106 = vperm.xlu0 %105, %v56
  %v107 = vpop.permute.xlu0 %106
  %v109 = vmul.f32 %v97, %v102
  %v110 = vmul.f32 %v98, %v107
  %111 = vset.pattern.permute.xlu0 1
  %112 = vperm.xlu0 %111, %v55
  %v113 = vpop.permute.xlu0 %112
  %115 = vset.pattern.permute.xlu0 1
  %116 = vperm.xlu0 %115, %v56
  %v117 = vpop.permute.xlu0 %116
  %v119 = vadd.f32 %v109, %v113
  %v120 = vadd.f32 %v110, %v117
  %v121 = vld [vmem:[%s1] sm:$0xff]
  %v122 = vld [vmem:[%s1 + $0x8] sm:$0xff]
  %v123 = vld [vmem:[%s1 + $0x10] sm:$0xff]
  %v124 = vld [vmem:[%s1 + $0x18] sm:$0xff]
  %125 = vrot.lane.b32.xlu0 %v119, 1
  %v126 = vpop.permute.xlu0 %125
  %127 = vrot.lane.b32.xlu0 %v120, 1
  %v128 = vpop.permute.xlu0 %127
  %v129 = vmul.f32 %v126, %v27
  %v130 = vmul.f32 %v128, %v27
  %131 = vrot.lane.b32.xlu0 %v119, 127
  %v132 = vpop.permute.xlu0 %131
  %133 = vrot.lane.b32.xlu0 %v120, 127
  %v134 = vpop.permute.xlu0 %133
  %v135 = vmul.f32 %v132, %v30
  %v136 = vmul.f32 %v134, %v30
  %137 = vset.pattern.permute.xlu0 2
  %138 = vperm.xlu0 %137, %v55
  %v139 = vpop.permute.xlu0 %138
  %141 = vset.pattern.permute.xlu0 2
  %142 = vperm.xlu0 %141, %v56
  %v143 = vpop.permute.xlu0 %142
  %146 = vset.pattern.permute.xlu0 2
  %147 = vperm.xlu0 %146, %v57
  %v148 = vpop.permute.xlu0 %147
  %151 = vset.pattern.permute.xlu0 2
  %152 = vperm.xlu0 %151, %v58
  %v153 = vpop.permute.xlu0 %152
  %vm155 = vcmask 392192
  %v157 = vsel %vm155, %v121, 0
  %v160 = vsel %vm155, %v122, 0
  %v163 = vsel %vm155, %v123, 0
  %v166 = vsel %vm155, %v124, 0
  %168 = vmatpush.msra.mxu0 0.0
  %169 = vmatpush.msra.mxu0 0.0
  %170 = vmatpush.msra.mxu0 0.0
  %171 = vmatpush.msra.mxu0 0.0
  %172 = vmatpush.msra.mxu0 0.0
  %173 = vmatpush.msra.mxu0 0.0
  %174 = vmatpush.msra.mxu0 0.0
  %175 = vmatpush.msra.mxu0 0.0
  %176 = vmatpush.msra.mxu0 0.0
  %177 = vmatpush.msra.mxu0 0.0
  %178 = vmatpush.msra.mxu0 %v136
  %179 = vmatpush.msra.mxu0 %v135
  %180 = vmatpush.msra.mxu0 %v120
  %181 = vmatpush.msra.mxu0 %v119
  %182 = vmatpush.msra.mxu0 %v130
  %183 = vmatpush.msra.mxu0 %v129
  %184 = vmatmul.f32.gmra.mxu0 %v157
  %v185 = vpop.f32.mrf.mxu0
  %v186 = vadd.f32 %v139, %v185
  %187 = vmatmul.f32.gmra.mxu0 %v160
  %v188 = vpop.f32.mrf.mxu0
  %v189 = vadd.f32 %v143, %v188
  %190 = vmatmul.f32.gmra.mxu0 %v163
  %v191 = vpop.f32.mrf.mxu0
  %v192 = vadd.f32 %v148, %v191
  %193 = vmatmul.f32.gmra.mxu0 %v166
  %v194 = vpop.f32.mrf.mxu0
  %v195 = vadd.f32 %v153, %v194
  %196 = vdwg.mxu0
  %v197 = vmul.f32 %v186, 0.5
  %v198 = vmul.f32 %v189, 0.5
  %v199 = vmul.f32 %v192, 0.5
  %v200 = vmul.f32 %v195, 0.5
  %v201 = vmul.f32 %v186, 0.70710677
  %v202 = vmul.f32 %v189, 0.70710677
  %v203 = vmul.f32 %v192, 0.70710677
  %v204 = vmul.f32 %v195, 0.70710677
  %v205 = vmul.f32 %v201, %v201
  %v206 = vmin.f32 16.0, %v205
  %v207 = vmul.f32 %v206, 2.1237322e-06
  %v208 = vadd.f32 %v207, 0.00028619796
  %v209 = vmul.f32 %v206, %v208
  %v210 = vadd.f32 %v209, 0.0036580483
  %v211 = vmul.f32 %v206, %v210
  %v212 = vadd.f32 %v211, 0.05243302
  %v213 = vmul.f32 %v206, %v212
  %v214 = vadd.f32 %v213, 0.18741608
  %v215 = vmul.f32 %v206, %v214
  %v216 = vadd.f32 %v215, 1.1283791
  %v217 = vmul.f32 %v201, %v216
  %v218 = vmul.f32 %v206, 3.8918573e-05
  %v219 = vadd.f32 %v218, 0.001143296
  %v220 = vmul.f32 %v206, %v219
  %v221 = vadd.f32 %v220, 0.014752088
  %v222 = vmul.f32 %v206, %v221
  %v223 = vadd.f32 %v222, 0.112945676
  %v224 = vmul.f32 %v206, %v223
  %v225 = vadd.f32 %v224, 0.4994258
  %v226 = vmul.f32 %v206, %v225
  %v227 = vadd.f32 %v226, 1.0
  %v228 = vrcp.pop %v227
  %v229 = vmul.f32 %v227, %v228
  %v230 = vsub.f32 1.0, %v229
  %v231 = vmul.f32 %v228, %v230
  %v232 = vadd.f32 %v228, %v231
  %vm233 = vweird.f32 %v227
  %vm234 = vweird.f32 %v228
  %vm235 = vmor %vm233, %vm234
  %v236 = vsel %vm235, %v228, %v232
  %v237 = vand.u32 2147483647, %v227
  %vm238 = vcmp.eq.f32.partialorder %v237, 8.507059e+37
  %v239 = vand.u32 %v227, 2147483648
  %v240 = vor.u32 1.1754944e-38, %v239
  %v241 = vsel %vm238, %v240, %v236
  %v242 = vmul.f32 %v217, %v241
  %v243 = vmin.f32 %v242, 1.0
  %v244 = vmax.f32 %v243, -1.0
  %v245 = vmul.f32 %v202, %v202
  %v246 = vmin.f32 16.0, %v245
  %v247 = vmul.f32 %v246, 2.1237322e-06
  %v248 = vadd.f32 %v247, 0.00028619796
  %v249 = vmul.f32 %v246, %v248
  %v250 = vadd.f32 %v249, 0.0036580483
  %v251 = vmul.f32 %v246, %v250
  %v252 = vadd.f32 %v251, 0.05243302
  %v253 = vmul.f32 %v246, %v252
  %v254 = vadd.f32 %v253, 0.18741608
  %v255 = vmul.f32 %v246, %v254
  %v256 = vadd.f32 %v255, 1.1283791
  %v257 = vmul.f32 %v202, %v256
  %v258 = vmul.f32 %v246, 3.8918573e-05
  %v259 = vadd.f32 %v258, 0.001143296
  %v260 = vmul.f32 %v246, %v259
  %v261 = vadd.f32 %v260, 0.014752088
  %v262 = vmul.f32 %v246, %v261
  %v263 = vadd.f32 %v262, 0.112945676
  %v264 = vmul.f32 %v246, %v263
  %v265 = vadd.f32 %v264, 0.4994258
  %v266 = vmul.f32 %v246, %v265
  %v267 = vadd.f32 %v266, 1.0
  %v268 = vrcp.pop %v267
  %v269 = vmul.f32 %v267, %v268
  %v270 = vsub.f32 1.0, %v269
  %v271 = vmul.f32 %v268, %v270
  %v272 = vadd.f32 %v268, %v271
  %vm273 = vweird.f32 %v267
  %vm274 = vweird.f32 %v268
  %vm275 = vmor %vm273, %vm274
  %v276 = vsel %vm275, %v268, %v272
  %v277 = vand.u32 2147483647, %v267
  %vm278 = vcmp.eq.f32.partialorder %v277, 8.507059e+37
  %v279 = vand.u32 %v267, 2147483648
  %v280 = vor.u32 1.1754944e-38, %v279
  %v281 = vsel %vm278, %v280, %v276
  %v282 = vmul.f32 %v257, %v281
  %v283 = vmin.f32 %v282, 1.0
  %v284 = vmax.f32 %v283, -1.0
  %v285 = vmul.f32 %v203, %v203
  %v286 = vmin.f32 16.0, %v285
  %v287 = vmul.f32 %v286, 2.1237322e-06
  %v288 = vadd.f32 %v287, 0.00028619796
  %v289 = vmul.f32 %v286, %v288
  %v290 = vadd.f32 %v289, 0.0036580483
  %v291 = vmul.f32 %v286, %v290
  %v292 = vadd.f32 %v291, 0.05243302
  %v293 = vmul.f32 %v286, %v292
  %v294 = vadd.f32 %v293, 0.18741608
  %v295 = vmul.f32 %v286, %v294
  %v296 = vadd.f32 %v295, 1.1283791
  %v297 = vmul.f32 %v203, %v296
  %v298 = vmul.f32 %v286, 3.8918573e-05
  %v299 = vadd.f32 %v298, 0.001143296
  %v300 = vmul.f32 %v286, %v299
  %v301 = vadd.f32 %v300, 0.014752088
  %v302 = vmul.f32 %v286, %v301
  %v303 = vadd.f32 %v302, 0.112945676
  %v304 = vmul.f32 %v286, %v303
  %v305 = vadd.f32 %v304, 0.4994258
  %v306 = vmul.f32 %v286, %v305
  %v307 = vadd.f32 %v306, 1.0
  %v308 = vrcp.pop %v307
  %v309 = vmul.f32 %v307, %v308
  %v310 = vsub.f32 1.0, %v309
  %v311 = vmul.f32 %v308, %v310
  %v312 = vadd.f32 %v308, %v311
  %vm313 = vweird.f32 %v307
  %vm314 = vweird.f32 %v308
  %vm315 = vmor %vm313, %vm314
  %v316 = vsel %vm315, %v308, %v312
  %v317 = vand.u32 2147483647, %v307
  %vm318 = vcmp.eq.f32.partialorder %v317, 8.507059e+37
  %v319 = vand.u32 %v307, 2147483648
  %v320 = vor.u32 1.1754944e-38, %v319
  %v321 = vsel %vm318, %v320, %v316
  %v322 = vmul.f32 %v297, %v321
  %v323 = vmin.f32 %v322, 1.0
  %v324 = vmax.f32 %v323, -1.0
  %v325 = vmul.f32 %v204, %v204
  %v326 = vmin.f32 16.0, %v325
  %v327 = vmul.f32 %v326, 2.1237322e-06
  %v328 = vadd.f32 %v327, 0.00028619796
  %v329 = vmul.f32 %v326, %v328
  %v330 = vadd.f32 %v329, 0.0036580483
  %v331 = vmul.f32 %v326, %v330
  %v332 = vadd.f32 %v331, 0.05243302
  %v333 = vmul.f32 %v326, %v332
  %v334 = vadd.f32 %v333, 0.18741608
  %v335 = vmul.f32 %v326, %v334
  %v336 = vadd.f32 %v335, 1.1283791
  %v337 = vmul.f32 %v204, %v336
  %v338 = vmul.f32 %v326, 3.8918573e-05
  %v339 = vadd.f32 %v338, 0.001143296
  %v340 = vmul.f32 %v326, %v339
  %v341 = vadd.f32 %v340, 0.014752088
  %v342 = vmul.f32 %v326, %v341
  %v343 = vadd.f32 %v342, 0.112945676
  %v344 = vmul.f32 %v326, %v343
  %v345 = vadd.f32 %v344, 0.4994258
  %v346 = vmul.f32 %v326, %v345
  %v347 = vadd.f32 %v346, 1.0
  %v348 = vrcp.pop %v347
  %v349 = vmul.f32 %v347, %v348
  %v350 = vsub.f32 1.0, %v349
  %v351 = vmul.f32 %v348, %v350
  %v352 = vadd.f32 %v348, %v351
  %vm353 = vweird.f32 %v347
  %vm354 = vweird.f32 %v348
  %vm355 = vmor %vm353, %vm354
  %v356 = vsel %vm355, %v348, %v352
  %v357 = vand.u32 2147483647, %v347
  %vm358 = vcmp.eq.f32.partialorder %v357, 8.507059e+37
  %v359 = vand.u32 %v347, 2147483648
  %v360 = vor.u32 1.1754944e-38, %v359
  %v361 = vsel %vm358, %v360, %v356
  %v362 = vmul.f32 %v337, %v361
  %v363 = vmin.f32 %v362, 1.0
  %v364 = vmax.f32 %v363, -1.0
  %v365 = vadd.f32 %v244, 1.0
  %v366 = vadd.f32 %v284, 1.0
  %v367 = vadd.f32 %v324, 1.0
  %v368 = vadd.f32 %v364, 1.0
  %v369 = vmul.f32 %v197, %v365
  %v370 = vmul.f32 %v198, %v366
  %v371 = vmul.f32 %v199, %v367
  %v372 = vmul.f32 %v200, %v368
  %v373 = vld [vmem:[%s2] sm:$0xff]
  %v374 = vld [vmem:[%s2 + $0x8] sm:$0xff]
  %375 = vset.pattern.permute.xlu0 3
  %376 = vperm.xlu0 %375, %v55
  %v377 = vpop.permute.xlu0 %376
  %379 = vset.pattern.permute.xlu0 3
  %380 = vperm.xlu0 %379, %v56
  %v381 = vpop.permute.xlu0 %380
  %vm383 = vcmask 261120
  %v385 = vsel %vm383, %v373, 0
  %v388 = vsel %vm383, %v374, 0
  %390 = vmatpush.msra.mxu0 0.0
  %391 = vmatpush.msra.mxu0 0.0
  %392 = vmatpush.msra.mxu0 0.0
  %393 = vmatpush.msra.mxu0 0.0
  %394 = vmatpush.msra.mxu0 0.0
  %395 = vmatpush.msra.mxu0 0.0
  %396 = vmatpush.msra.mxu0 0.0
  %397 = vmatpush.msra.mxu0 0.0
  %398 = vmatpush.msra.mxu0 0.0
  %399 = vmatpush.msra.mxu0 0.0
  %400 = vmatpush.msra.mxu0 0.0
  %401 = vmatpush.msra.mxu0 0.0
  %402 = vmatpush.msra.mxu0 %v372
  %403 = vmatpush.msra.mxu0 %v371
  %404 = vmatpush.msra.mxu0 %v370
  %405 = vmatpush.msra.mxu0 %v369
  %406 = vmatmul.f32.gmra.mxu0 %v385
  %v407 = vpop.f32.mrf.mxu0
  %v408 = vadd.f32 %v377, %v407
  %409 = vmatmul.f32.gmra.mxu0 %v388
  %v410 = vpop.f32.mrf.mxu0
  %v411 = vadd.f32 %v381, %v410
  %412 = vdwg.mxu0
  %v413 = vadd.f32 %v20, %v408
  %v414 = vadd.f32 %v21, %v411
  %v415 = vmul.f32 %v413, %v54
  %v416 = vmul.f32 %v414, %v54
  %v417 = vadd.f32 %v415, %v416
  %v418 = vrot.slane %v417, 4
  %v419 = vadd.f32 %v417, %v418
  %v420 = vrot.slane %v419, 2
  %v421 = vadd.f32 %v419, %v420
  %v422 = vrot.slane %v421, 1
  %v423 = vadd.f32 %v421, %v422
  %v424 = vmul.f32 %v423, %v72
  %v425 = vsub.f32 %v415, %v424
  %v426 = vsub.f32 %v416, %v424
  %v427 = vmul.f32 %v425, %v425
  %v428 = vmul.f32 %v426, %v426
  %v429 = vadd.f32 %v427, %v428
  %v430 = vrot.slane %v429, 4
  %v431 = vadd.f32 %v429, %v430
  %v432 = vrot.slane %v431, 2
  %v433 = vadd.f32 %v431, %v432
  %v434 = vrot.slane %v433, 1
  %v435 = vadd.f32 %v433, %v434
  %v436 = vmul.f32 %v435, %v72
  %v437 = vadd.f32 %v436, 1e-05
  %v438 = vrsqrt.pop %v437
  %v439 = vmul.f32 %v438, %v437
  %v440 = vmul.f32 %v439, %v438
  %v441 = vmul.f32 0.5, %v440
  %v442 = vsub.f32 1.5, %v441
  %v443 = vmul.f32 %v438, %v442
  %vm444 = vweird.f32 %v437
  %vm445 = vweird.f32 %v438
  %vm446 = vmor %vm444, %vm445
  %v447 = vsel %vm446, %v438, %v443
  %v448 = vmul.f32 %v425, %v447
  %v449 = vmul.f32 %v426, %v447
  %450 = vset.pattern.permute.xlu0 4
  %451 = vperm.xlu0 %450, %v55
  %v452 = vpop.permute.xlu0 %451
  %454 = vset.pattern.permute.xlu0 4
  %455 = vperm.xlu0 %454, %v56
  %v456 = vpop.permute.xlu0 %455
  %v458 = vmul.f32 %v448, %v452
  %v459 = vmul.f32 %v449, %v456
  %460 = vset.pattern.permute.xlu0 5
  %461 = vperm.xlu0 %460, %v55
  %v462 = vpop.permute.xlu0 %461
  %464 = vset.pattern.permute.xlu0 5
  %465 = vperm.xlu0 %464, %v56
  %v466 = vpop.permute.xlu0 %465
  %v468 = vadd.f32 %v458, %v462
  %v469 = vadd.f32 %v459, %v466
  %s470 = scalar_lea.vmem %s1, 32
  %v471 = vld [vmem:[%s470] sm:$0xff]
  %v472 = vld [vmem:[%s470 + $0x8] sm:$0xff]
  %v473 = vld [vmem:[%s470 + $0x10] sm:$0xff]
  %v474 = vld [vmem:[%s470 + $0x18] sm:$0xff]
  %475 = vrot.lane.b32.xlu0 %v468, 1
  %v476 = vpop.permute.xlu0 %475
  %477 = vrot.lane.b32.xlu0 %v469, 1
  %v478 = vpop.permute.xlu0 %477
  %v479 = vmul.f32 %v476, %v27
  %v480 = vmul.f32 %v478, %v27
  %481 = vrot.lane.b32.xlu0 %v468, 127
  %v482 = vpop.permute.xlu0 %481
  %483 = vrot.lane.b32.xlu0 %v469, 127
  %v484 = vpop.permute.xlu0 %483
  %v485 = vmul.f32 %v482, %v30
  %v486 = vmul.f32 %v484, %v30
  %487 = vset.pattern.permute.xlu0 6
  %488 = vperm.xlu0 %487, %v55
  %v489 = vpop.permute.xlu0 %488
  %491 = vset.pattern.permute.xlu0 6
  %492 = vperm.xlu0 %491, %v56
  %v493 = vpop.permute.xlu0 %492
  %495 = vset.pattern.permute.xlu0 6
  %496 = vperm.xlu0 %495, %v57
  %v497 = vpop.permute.xlu0 %496
  %499 = vset.pattern.permute.xlu0 6
  %500 = vperm.xlu0 %499, %v58
  %v501 = vpop.permute.xlu0 %500
  %v504 = vsel %vm155, %v471, 0
  %v507 = vsel %vm155, %v472, 0
  %v510 = vsel %vm155, %v473, 0
  %v513 = vsel %vm155, %v474, 0
  %515 = vmatpush.msra.mxu0 0.0
  %516 = vmatpush.msra.mxu0 0.0
  %517 = vmatpush.msra.mxu0 0.0
  %518 = vmatpush.msra.mxu0 0.0
  %519 = vmatpush.msra.mxu0 0.0
  %520 = vmatpush.msra.mxu0 0.0
  %521 = vmatpush.msra.mxu0 0.0
  %522 = vmatpush.msra.mxu0 0.0
  %523 = vmatpush.msra.mxu0 0.0
  %524 = vmatpush.msra.mxu0 0.0
  %525 = vmatpush.msra.mxu0 %v486
  %526 = vmatpush.msra.mxu0 %v485
  %527 = vmatpush.msra.mxu0 %v469
  %528 = vmatpush.msra.mxu0 %v468
  %529 = vmatpush.msra.mxu0 %v480
  %530 = vmatpush.msra.mxu0 %v479
  %531 = vmatmul.f32.gmra.mxu0 %v504
  %v532 = vpop.f32.mrf.mxu0
  %v533 = vadd.f32 %v489, %v532
  %534 = vmatmul.f32.gmra.mxu0 %v507
  %v535 = vpop.f32.mrf.mxu0
  %v536 = vadd.f32 %v493, %v535
  %537 = vmatmul.f32.gmra.mxu0 %v510
  %v538 = vpop.f32.mrf.mxu0
  %v539 = vadd.f32 %v497, %v538
  %540 = vmatmul.f32.gmra.mxu0 %v513
  %v541 = vpop.f32.mrf.mxu0
  %v542 = vadd.f32 %v501, %v541
  %543 = vdwg.mxu0
  %v544 = vmul.f32 %v533, 0.5
  %v545 = vmul.f32 %v536, 0.5
  %v546 = vmul.f32 %v539, 0.5
  %v547 = vmul.f32 %v542, 0.5
  %v548 = vmul.f32 %v533, 0.70710677
  %v549 = vmul.f32 %v536, 0.70710677
  %v550 = vmul.f32 %v539, 0.70710677
  %v551 = vmul.f32 %v542, 0.70710677
  %v552 = vmul.f32 %v548, %v548
  %v553 = vmin.f32 16.0, %v552
  %v554 = vmul.f32 %v553, 2.1237322e-06
  %v555 = vadd.f32 %v554, 0.00028619796
  %v556 = vmul.f32 %v553, %v555
  %v557 = vadd.f32 %v556, 0.0036580483
  %v558 = vmul.f32 %v553, %v557
  %v559 = vadd.f32 %v558, 0.05243302
  %v560 = vmul.f32 %v553, %v559
  %v561 = vadd.f32 %v560, 0.18741608
  %v562 = vmul.f32 %v553, %v561
  %v563 = vadd.f32 %v562, 1.1283791
  %v564 = vmul.f32 %v548, %v563
  %v565 = vmul.f32 %v553, 3.8918573e-05
  %v566 = vadd.f32 %v565, 0.001143296
  %v567 = vmul.f32 %v553, %v566
  %v568 = vadd.f32 %v567, 0.014752088
  %v569 = vmul.f32 %v553, %v568
  %v570 = vadd.f32 %v569, 0.112945676
  %v571 = vmul.f32 %v553, %v570
  %v572 = vadd.f32 %v571, 0.4994258
  %v573 = vmul.f32 %v553, %v572
  %v574 = vadd.f32 %v573, 1.0
  %v575 = vrcp.pop %v574
  %v576 = vmul.f32 %v574, %v575
  %v577 = vsub.f32 1.0, %v576
  %v578 = vmul.f32 %v575, %v577
  %v579 = vadd.f32 %v575, %v578
  %vm580 = vweird.f32 %v574
  %vm581 = vweird.f32 %v575
  %vm582 = vmor %vm580, %vm581
  %v583 = vsel %vm582, %v575, %v579
  %v584 = vand.u32 2147483647, %v574
  %vm585 = vcmp.eq.f32.partialorder %v584, 8.507059e+37
  %v586 = vand.u32 %v574, 2147483648
  %v587 = vor.u32 1.1754944e-38, %v586
  %v588 = vsel %vm585, %v587, %v583
  %v589 = vmul.f32 %v564, %v588
  %v590 = vmin.f32 %v589, 1.0
  %v591 = vmax.f32 %v590, -1.0
  %v592 = vmul.f32 %v549, %v549
  %v593 = vmin.f32 16.0, %v592
  %v594 = vmul.f32 %v593, 2.1237322e-06
  %v595 = vadd.f32 %v594, 0.00028619796
  %v596 = vmul.f32 %v593, %v595
  %v597 = vadd.f32 %v596, 0.0036580483
  %v598 = vmul.f32 %v593, %v597
  %v599 = vadd.f32 %v598, 0.05243302
  %v600 = vmul.f32 %v593, %v599
  %v601 = vadd.f32 %v600, 0.18741608
  %v602 = vmul.f32 %v593, %v601
  %v603 = vadd.f32 %v602, 1.1283791
  %v604 = vmul.f32 %v549, %v603
  %v605 = vmul.f32 %v593, 3.8918573e-05
  %v606 = vadd.f32 %v605, 0.001143296
  %v607 = vmul.f32 %v593, %v606
  %v608 = vadd.f32 %v607, 0.014752088
  %v609 = vmul.f32 %v593, %v608
  %v610 = vadd.f32 %v609, 0.112945676
  %v611 = vmul.f32 %v593, %v610
  %v612 = vadd.f32 %v611, 0.4994258
  %v613 = vmul.f32 %v593, %v612
  %v614 = vadd.f32 %v613, 1.0
  %v615 = vrcp.pop %v614
  %v616 = vmul.f32 %v614, %v615
  %v617 = vsub.f32 1.0, %v616
  %v618 = vmul.f32 %v615, %v617
  %v619 = vadd.f32 %v615, %v618
  %vm620 = vweird.f32 %v614
  %vm621 = vweird.f32 %v615
  %vm622 = vmor %vm620, %vm621
  %v623 = vsel %vm622, %v615, %v619
  %v624 = vand.u32 2147483647, %v614
  %vm625 = vcmp.eq.f32.partialorder %v624, 8.507059e+37
  %v626 = vand.u32 %v614, 2147483648
  %v627 = vor.u32 1.1754944e-38, %v626
  %v628 = vsel %vm625, %v627, %v623
  %v629 = vmul.f32 %v604, %v628
  %v630 = vmin.f32 %v629, 1.0
  %v631 = vmax.f32 %v630, -1.0
  %v632 = vmul.f32 %v550, %v550
  %v633 = vmin.f32 16.0, %v632
  %v634 = vmul.f32 %v633, 2.1237322e-06
  %v635 = vadd.f32 %v634, 0.00028619796
  %v636 = vmul.f32 %v633, %v635
  %v637 = vadd.f32 %v636, 0.0036580483
  %v638 = vmul.f32 %v633, %v637
  %v639 = vadd.f32 %v638, 0.05243302
  %v640 = vmul.f32 %v633, %v639
  %v641 = vadd.f32 %v640, 0.18741608
  %v642 = vmul.f32 %v633, %v641
  %v643 = vadd.f32 %v642, 1.1283791
  %v644 = vmul.f32 %v550, %v643
  %v645 = vmul.f32 %v633, 3.8918573e-05
  %v646 = vadd.f32 %v645, 0.001143296
  %v647 = vmul.f32 %v633, %v646
  %v648 = vadd.f32 %v647, 0.014752088
  %v649 = vmul.f32 %v633, %v648
  %v650 = vadd.f32 %v649, 0.112945676
  %v651 = vmul.f32 %v633, %v650
  %v652 = vadd.f32 %v651, 0.4994258
  %v653 = vmul.f32 %v633, %v652
  %v654 = vadd.f32 %v653, 1.0
  %v655 = vrcp.pop %v654
  %v656 = vmul.f32 %v654, %v655
  %v657 = vsub.f32 1.0, %v656
  %v658 = vmul.f32 %v655, %v657
  %v659 = vadd.f32 %v655, %v658
  %vm660 = vweird.f32 %v654
  %vm661 = vweird.f32 %v655
  %vm662 = vmor %vm660, %vm661
  %v663 = vsel %vm662, %v655, %v659
  %v664 = vand.u32 2147483647, %v654
  %vm665 = vcmp.eq.f32.partialorder %v664, 8.507059e+37
  %v666 = vand.u32 %v654, 2147483648
  %v667 = vor.u32 1.1754944e-38, %v666
  %v668 = vsel %vm665, %v667, %v663
  %v669 = vmul.f32 %v644, %v668
  %v670 = vmin.f32 %v669, 1.0
  %v671 = vmax.f32 %v670, -1.0
  %v672 = vmul.f32 %v551, %v551
  %v673 = vmin.f32 16.0, %v672
  %v674 = vmul.f32 %v673, 2.1237322e-06
  %v675 = vadd.f32 %v674, 0.00028619796
  %v676 = vmul.f32 %v673, %v675
  %v677 = vadd.f32 %v676, 0.0036580483
  %v678 = vmul.f32 %v673, %v677
  %v679 = vadd.f32 %v678, 0.05243302
  %v680 = vmul.f32 %v673, %v679
  %v681 = vadd.f32 %v680, 0.18741608
  %v682 = vmul.f32 %v673, %v681
  %v683 = vadd.f32 %v682, 1.1283791
  %v684 = vmul.f32 %v551, %v683
  %v685 = vmul.f32 %v673, 3.8918573e-05
  %v686 = vadd.f32 %v685, 0.001143296
  %v687 = vmul.f32 %v673, %v686
  %v688 = vadd.f32 %v687, 0.014752088
  %v689 = vmul.f32 %v673, %v688
  %v690 = vadd.f32 %v689, 0.112945676
  %v691 = vmul.f32 %v673, %v690
  %v692 = vadd.f32 %v691, 0.4994258
  %v693 = vmul.f32 %v673, %v692
  %v694 = vadd.f32 %v693, 1.0
  %v695 = vrcp.pop %v694
  %v696 = vmul.f32 %v694, %v695
  %v697 = vsub.f32 1.0, %v696
  %v698 = vmul.f32 %v695, %v697
  %v699 = vadd.f32 %v695, %v698
  %vm700 = vweird.f32 %v694
  %vm701 = vweird.f32 %v695
  %vm702 = vmor %vm700, %vm701
  %v703 = vsel %vm702, %v695, %v699
  %v704 = vand.u32 2147483647, %v694
  %vm705 = vcmp.eq.f32.partialorder %v704, 8.507059e+37
  %v706 = vand.u32 %v694, 2147483648
  %v707 = vor.u32 1.1754944e-38, %v706
  %v708 = vsel %vm705, %v707, %v703
  %v709 = vmul.f32 %v684, %v708
  %v710 = vmin.f32 %v709, 1.0
  %v711 = vmax.f32 %v710, -1.0
  %v712 = vadd.f32 %v591, 1.0
  %v713 = vadd.f32 %v631, 1.0
  %v714 = vadd.f32 %v671, 1.0
  %v715 = vadd.f32 %v711, 1.0
  %v716 = vmul.f32 %v544, %v712
  %v717 = vmul.f32 %v545, %v713
  %v718 = vmul.f32 %v546, %v714
  %v719 = vmul.f32 %v547, %v715
  %s720 = scalar_lea.vmem %s2, 16
  %v721 = vld [vmem:[%s720] sm:$0xff]
  %v722 = vld [vmem:[%s720 + $0x8] sm:$0xff]
  %723 = vset.pattern.permute.xlu0 7
  %724 = vperm.xlu0 %723, %v55
  %v725 = vpop.permute.xlu0 %724
  %727 = vset.pattern.permute.xlu0 7
  %728 = vperm.xlu0 %727, %v56
  %v729 = vpop.permute.xlu0 %728
  %v732 = vsel %vm383, %v721, 0
  %v735 = vsel %vm383, %v722, 0
  %737 = vmatpush.msra.mxu0 0.0
  %738 = vmatpush.msra.mxu0 0.0
  %739 = vmatpush.msra.mxu0 0.0
  %740 = vmatpush.msra.mxu0 0.0
  %741 = vmatpush.msra.mxu0 0.0
  %742 = vmatpush.msra.mxu0 0.0
  %743 = vmatpush.msra.mxu0 0.0
  %744 = vmatpush.msra.mxu0 0.0
  %745 = vmatpush.msra.mxu0 0.0
  %746 = vmatpush.msra.mxu0 0.0
  %747 = vmatpush.msra.mxu0 0.0
  %748 = vmatpush.msra.mxu0 0.0
  %749 = vmatpush.msra.mxu0 %v719
  %750 = vmatpush.msra.mxu0 %v718
  %751 = vmatpush.msra.mxu0 %v717
  %752 = vmatpush.msra.mxu0 %v716
  %753 = vmatmul.f32.gmra.mxu0 %v732
  %v754 = vpop.f32.mrf.mxu0
  %v755 = vadd.f32 %v725, %v754
  %756 = vmatmul.f32.gmra.mxu0 %v735
  %v757 = vpop.f32.mrf.mxu0
  %v758 = vadd.f32 %v729, %v757
  %759 = vdwg.mxu0
  %v760 = vadd.f32 %v415, %v755
  %v761 = vadd.f32 %v416, %v758
  %v762 = vmul.f32 %v760, %v54
  %v763 = vmul.f32 %v761, %v54
  %v764 = vadd.f32 %v762, %v763
  %v765 = vrot.slane %v764, 4
  %v766 = vadd.f32 %v764, %v765
  %v767 = vrot.slane %v766, 2
  %v768 = vadd.f32 %v766, %v767
  %v769 = vrot.slane %v768, 1
  %v770 = vadd.f32 %v768, %v769
  %v771 = vmul.f32 %v770, %v72
  %v772 = vsub.f32 %v762, %v771
  %v773 = vsub.f32 %v763, %v771
  %v774 = vmul.f32 %v772, %v772
  %v775 = vmul.f32 %v773, %v773
  %v776 = vadd.f32 %v774, %v775
  %v777 = vrot.slane %v776, 4
  %v778 = vadd.f32 %v776, %v777
  %v779 = vrot.slane %v778, 2
  %v780 = vadd.f32 %v778, %v779
  %v781 = vrot.slane %v780, 1
  %v782 = vadd.f32 %v780, %v781
  %v783 = vmul.f32 %v782, %v72
  %v784 = vadd.f32 %v783, 1e-05
  %v785 = vrsqrt.pop %v784
  %v786 = vmul.f32 %v785, %v784
  %v787 = vmul.f32 %v786, %v785
  %v788 = vmul.f32 0.5, %v787
  %v789 = vsub.f32 1.5, %v788
  %v790 = vmul.f32 %v785, %v789
  %vm791 = vweird.f32 %v784
  %vm792 = vweird.f32 %v785
  %vm793 = vmor %vm791, %vm792
  %v794 = vsel %vm793, %v785, %v790
  %v795 = vmul.f32 %v772, %v794
  %v796 = vmul.f32 %v773, %v794
  %797 = vset.pattern.permute.xlu0 8
  %798 = vperm.xlu0 %797, %v55
  %v799 = vpop.permute.xlu0 %798
  %801 = vset.pattern.permute.xlu0 8
  %802 = vperm.xlu0 %801, %v56
  %v803 = vpop.permute.xlu0 %802
  %v805 = vmul.f32 %v795, %v799
  %v806 = vmul.f32 %v796, %v803
  %807 = vset.pattern.permute.xlu0 9
  %808 = vperm.xlu0 %807, %v55
  %v809 = vpop.permute.xlu0 %808
  %811 = vset.pattern.permute.xlu0 9
  %812 = vperm.xlu0 %811, %v56
  %v813 = vpop.permute.xlu0 %812
  %v815 = vadd.f32 %v805, %v809
  %v816 = vadd.f32 %v806, %v813
  %s817 = scalar_lea.vmem %s1, 64
  %v818 = vld [vmem:[%s817] sm:$0xff]
  %v819 = vld [vmem:[%s817 + $0x8] sm:$0xff]
  %v820 = vld [vmem:[%s817 + $0x10] sm:$0xff]
  %v821 = vld [vmem:[%s817 + $0x18] sm:$0xff]
  %822 = vrot.lane.b32.xlu0 %v815, 2
  %v823 = vpop.permute.xlu0 %822
  %824 = vrot.lane.b32.xlu0 %v816, 2
  %v825 = vpop.permute.xlu0 %824
  %v826 = vmul.f32 %v823, %v33
  %v827 = vmul.f32 %v825, %v33
  %828 = vrot.lane.b32.xlu0 %v815, 126
  %v829 = vpop.permute.xlu0 %828
  %830 = vrot.lane.b32.xlu0 %v816, 126
  %v831 = vpop.permute.xlu0 %830
  %v832 = vmul.f32 %v829, %v36
  %v833 = vmul.f32 %v831, %v36
  %834 = vset.pattern.permute.xlu0 10
  %835 = vperm.xlu0 %834, %v55
  %v836 = vpop.permute.xlu0 %835
  %838 = vset.pattern.permute.xlu0 10
  %839 = vperm.xlu0 %838, %v56
  %v840 = vpop.permute.xlu0 %839
  %842 = vset.pattern.permute.xlu0 10
  %843 = vperm.xlu0 %842, %v57
  %v844 = vpop.permute.xlu0 %843
  %846 = vset.pattern.permute.xlu0 10
  %847 = vperm.xlu0 %846, %v58
  %v848 = vpop.permute.xlu0 %847
  %v851 = vsel %vm155, %v818, 0
  %v854 = vsel %vm155, %v819, 0
  %v857 = vsel %vm155, %v820, 0
  %v860 = vsel %vm155, %v821, 0
  %862 = vmatpush.msra.mxu0 0.0
  %863 = vmatpush.msra.mxu0 0.0
  %864 = vmatpush.msra.mxu0 0.0
  %865 = vmatpush.msra.mxu0 0.0
  %866 = vmatpush.msra.mxu0 0.0
  %867 = vmatpush.msra.mxu0 0.0
  %868 = vmatpush.msra.mxu0 0.0
  %869 = vmatpush.msra.mxu0 0.0
  %870 = vmatpush.msra.mxu0 0.0
  %871 = vmatpush.msra.mxu0 0.0
  %872 = vmatpush.msra.mxu0 %v833
  %873 = vmatpush.msra.mxu0 %v832
  %874 = vmatpush.msra.mxu0 %v816
  %875 = vmatpush.msra.mxu0 %v815
  %876 = vmatpush.msra.mxu0 %v827
  %877 = vmatpush.msra.mxu0 %v826
  %878 = vmatmul.f32.gmra.mxu0 %v851
  %v879 = vpop.f32.mrf.mxu0
  %v880 = vadd.f32 %v836, %v879
  %881 = vmatmul.f32.gmra.mxu0 %v854
  %v882 = vpop.f32.mrf.mxu0
  %v883 = vadd.f32 %v840, %v882
  %884 = vmatmul.f32.gmra.mxu0 %v857
  %v885 = vpop.f32.mrf.mxu0
  %v886 = vadd.f32 %v844, %v885
  %887 = vmatmul.f32.gmra.mxu0 %v860
  %v888 = vpop.f32.mrf.mxu0
  %v889 = vadd.f32 %v848, %v888
  %890 = vdwg.mxu0
  %v891 = vmul.f32 %v880, 0.5
  %v892 = vmul.f32 %v883, 0.5
  %v893 = vmul.f32 %v886, 0.5
  %v894 = vmul.f32 %v889, 0.5
  %v895 = vmul.f32 %v880, 0.70710677
  %v896 = vmul.f32 %v883, 0.70710677
  %v897 = vmul.f32 %v886, 0.70710677
  %v898 = vmul.f32 %v889, 0.70710677
  %v899 = vmul.f32 %v895, %v895
  %v900 = vmin.f32 16.0, %v899
  %v901 = vmul.f32 %v900, 2.1237322e-06
  %v902 = vadd.f32 %v901, 0.00028619796
  %v903 = vmul.f32 %v900, %v902
  %v904 = vadd.f32 %v903, 0.0036580483
  %v905 = vmul.f32 %v900, %v904
  %v906 = vadd.f32 %v905, 0.05243302
  %v907 = vmul.f32 %v900, %v906
  %v908 = vadd.f32 %v907, 0.18741608
  %v909 = vmul.f32 %v900, %v908
  %v910 = vadd.f32 %v909, 1.1283791
  %v911 = vmul.f32 %v895, %v910
  %v912 = vmul.f32 %v900, 3.8918573e-05
  %v913 = vadd.f32 %v912, 0.001143296
  %v914 = vmul.f32 %v900, %v913
  %v915 = vadd.f32 %v914, 0.014752088
  %v916 = vmul.f32 %v900, %v915
  %v917 = vadd.f32 %v916, 0.112945676
  %v918 = vmul.f32 %v900, %v917
  %v919 = vadd.f32 %v918, 0.4994258
  %v920 = vmul.f32 %v900, %v919
  %v921 = vadd.f32 %v920, 1.0
  %v922 = vrcp.pop %v921
  %v923 = vmul.f32 %v921, %v922
  %v924 = vsub.f32 1.0, %v923
  %v925 = vmul.f32 %v922, %v924
  %v926 = vadd.f32 %v922, %v925
  %vm927 = vweird.f32 %v921
  %vm928 = vweird.f32 %v922
  %vm929 = vmor %vm927, %vm928
  %v930 = vsel %vm929, %v922, %v926
  %v931 = vand.u32 2147483647, %v921
  %vm932 = vcmp.eq.f32.partialorder %v931, 8.507059e+37
  %v933 = vand.u32 %v921, 2147483648
  %v934 = vor.u32 1.1754944e-38, %v933
  %v935 = vsel %vm932, %v934, %v930
  %v936 = vmul.f32 %v911, %v935
  %v937 = vmin.f32 %v936, 1.0
  %v938 = vmax.f32 %v937, -1.0
  %v939 = vmul.f32 %v896, %v896
  %v940 = vmin.f32 16.0, %v939
  %v941 = vmul.f32 %v940, 2.1237322e-06
  %v942 = vadd.f32 %v941, 0.00028619796
  %v943 = vmul.f32 %v940, %v942
  %v944 = vadd.f32 %v943, 0.0036580483
  %v945 = vmul.f32 %v940, %v944
  %v946 = vadd.f32 %v945, 0.05243302
  %v947 = vmul.f32 %v940, %v946
  %v948 = vadd.f32 %v947, 0.18741608
  %v949 = vmul.f32 %v940, %v948
  %v950 = vadd.f32 %v949, 1.1283791
  %v951 = vmul.f32 %v896, %v950
  %v952 = vmul.f32 %v940, 3.8918573e-05
  %v953 = vadd.f32 %v952, 0.001143296
  %v954 = vmul.f32 %v940, %v953
  %v955 = vadd.f32 %v954, 0.014752088
  %v956 = vmul.f32 %v940, %v955
  %v957 = vadd.f32 %v956, 0.112945676
  %v958 = vmul.f32 %v940, %v957
  %v959 = vadd.f32 %v958, 0.4994258
  %v960 = vmul.f32 %v940, %v959
  %v961 = vadd.f32 %v960, 1.0
  %v962 = vrcp.pop %v961
  %v963 = vmul.f32 %v961, %v962
  %v964 = vsub.f32 1.0, %v963
  %v965 = vmul.f32 %v962, %v964
  %v966 = vadd.f32 %v962, %v965
  %vm967 = vweird.f32 %v961
  %vm968 = vweird.f32 %v962
  %vm969 = vmor %vm967, %vm968
  %v970 = vsel %vm969, %v962, %v966
  %v971 = vand.u32 2147483647, %v961
  %vm972 = vcmp.eq.f32.partialorder %v971, 8.507059e+37
  %v973 = vand.u32 %v961, 2147483648
  %v974 = vor.u32 1.1754944e-38, %v973
  %v975 = vsel %vm972, %v974, %v970
  %v976 = vmul.f32 %v951, %v975
  %v977 = vmin.f32 %v976, 1.0
  %v978 = vmax.f32 %v977, -1.0
  %v979 = vmul.f32 %v897, %v897
  %v980 = vmin.f32 16.0, %v979
  %v981 = vmul.f32 %v980, 2.1237322e-06
  %v982 = vadd.f32 %v981, 0.00028619796
  %v983 = vmul.f32 %v980, %v982
  %v984 = vadd.f32 %v983, 0.0036580483
  %v985 = vmul.f32 %v980, %v984
  %v986 = vadd.f32 %v985, 0.05243302
  %v987 = vmul.f32 %v980, %v986
  %v988 = vadd.f32 %v987, 0.18741608
  %v989 = vmul.f32 %v980, %v988
  %v990 = vadd.f32 %v989, 1.1283791
  %v991 = vmul.f32 %v897, %v990
  %v992 = vmul.f32 %v980, 3.8918573e-05
  %v993 = vadd.f32 %v992, 0.001143296
  %v994 = vmul.f32 %v980, %v993
  %v995 = vadd.f32 %v994, 0.014752088
  %v996 = vmul.f32 %v980, %v995
  %v997 = vadd.f32 %v996, 0.112945676
  %v998 = vmul.f32 %v980, %v997
  %v999 = vadd.f32 %v998, 0.4994258
  %v1000 = vmul.f32 %v980, %v999
  %v1001 = vadd.f32 %v1000, 1.0
  %v1002 = vrcp.pop %v1001
  %v1003 = vmul.f32 %v1001, %v1002
  %v1004 = vsub.f32 1.0, %v1003
  %v1005 = vmul.f32 %v1002, %v1004
  %v1006 = vadd.f32 %v1002, %v1005
  %vm1007 = vweird.f32 %v1001
  %vm1008 = vweird.f32 %v1002
  %vm1009 = vmor %vm1007, %vm1008
  %v1010 = vsel %vm1009, %v1002, %v1006
  %v1011 = vand.u32 2147483647, %v1001
  %vm1012 = vcmp.eq.f32.partialorder %v1011, 8.507059e+37
  %v1013 = vand.u32 %v1001, 2147483648
  %v1014 = vor.u32 1.1754944e-38, %v1013
  %v1015 = vsel %vm1012, %v1014, %v1010
  %v1016 = vmul.f32 %v991, %v1015
  %v1017 = vmin.f32 %v1016, 1.0
  %v1018 = vmax.f32 %v1017, -1.0
  %v1019 = vmul.f32 %v898, %v898
  %v1020 = vmin.f32 16.0, %v1019
  %v1021 = vmul.f32 %v1020, 2.1237322e-06
  %v1022 = vadd.f32 %v1021, 0.00028619796
  %v1023 = vmul.f32 %v1020, %v1022
  %v1024 = vadd.f32 %v1023, 0.0036580483
  %v1025 = vmul.f32 %v1020, %v1024
  %v1026 = vadd.f32 %v1025, 0.05243302
  %v1027 = vmul.f32 %v1020, %v1026
  %v1028 = vadd.f32 %v1027, 0.18741608
  %v1029 = vmul.f32 %v1020, %v1028
  %v1030 = vadd.f32 %v1029, 1.1283791
  %v1031 = vmul.f32 %v898, %v1030
  %v1032 = vmul.f32 %v1020, 3.8918573e-05
  %v1033 = vadd.f32 %v1032, 0.001143296
  %v1034 = vmul.f32 %v1020, %v1033
  %v1035 = vadd.f32 %v1034, 0.014752088
  %v1036 = vmul.f32 %v1020, %v1035
  %v1037 = vadd.f32 %v1036, 0.112945676
  %v1038 = vmul.f32 %v1020, %v1037
  %v1039 = vadd.f32 %v1038, 0.4994258
  %v1040 = vmul.f32 %v1020, %v1039
  %v1041 = vadd.f32 %v1040, 1.0
  %v1042 = vrcp.pop %v1041
  %v1043 = vmul.f32 %v1041, %v1042
  %v1044 = vsub.f32 1.0, %v1043
  %v1045 = vmul.f32 %v1042, %v1044
  %v1046 = vadd.f32 %v1042, %v1045
  %vm1047 = vweird.f32 %v1041
  %vm1048 = vweird.f32 %v1042
  %vm1049 = vmor %vm1047, %vm1048
  %v1050 = vsel %vm1049, %v1042, %v1046
  %v1051 = vand.u32 2147483647, %v1041
  %vm1052 = vcmp.eq.f32.partialorder %v1051, 8.507059e+37
  %v1053 = vand.u32 %v1041, 2147483648
  %v1054 = vor.u32 1.1754944e-38, %v1053
  %v1055 = vsel %vm1052, %v1054, %v1050
  %v1056 = vmul.f32 %v1031, %v1055
  %v1057 = vmin.f32 %v1056, 1.0
  %v1058 = vmax.f32 %v1057, -1.0
  %v1059 = vadd.f32 %v938, 1.0
  %v1060 = vadd.f32 %v978, 1.0
  %v1061 = vadd.f32 %v1018, 1.0
  %v1062 = vadd.f32 %v1058, 1.0
  %v1063 = vmul.f32 %v891, %v1059
  %v1064 = vmul.f32 %v892, %v1060
  %v1065 = vmul.f32 %v893, %v1061
  %v1066 = vmul.f32 %v894, %v1062
  %s1067 = scalar_lea.vmem %s2, 32
  %v1068 = vld [vmem:[%s1067] sm:$0xff]
  %v1069 = vld [vmem:[%s1067 + $0x8] sm:$0xff]
  %1070 = vset.pattern.permute.xlu0 11
  %1071 = vperm.xlu0 %1070, %v55
  %v1072 = vpop.permute.xlu0 %1071
  %1074 = vset.pattern.permute.xlu0 11
  %1075 = vperm.xlu0 %1074, %v56
  %v1076 = vpop.permute.xlu0 %1075
  %v1079 = vsel %vm383, %v1068, 0
  %v1082 = vsel %vm383, %v1069, 0
  %1084 = vmatpush.msra.mxu0 0.0
  %1085 = vmatpush.msra.mxu0 0.0
  %1086 = vmatpush.msra.mxu0 0.0
  %1087 = vmatpush.msra.mxu0 0.0
  %1088 = vmatpush.msra.mxu0 0.0
  %1089 = vmatpush.msra.mxu0 0.0
  %1090 = vmatpush.msra.mxu0 0.0
  %1091 = vmatpush.msra.mxu0 0.0
  %1092 = vmatpush.msra.mxu0 0.0
  %1093 = vmatpush.msra.mxu0 0.0
  %1094 = vmatpush.msra.mxu0 0.0
  %1095 = vmatpush.msra.mxu0 0.0
  %1096 = vmatpush.msra.mxu0 %v1066
  %1097 = vmatpush.msra.mxu0 %v1065
  %1098 = vmatpush.msra.mxu0 %v1064
  %1099 = vmatpush.msra.mxu0 %v1063
  %1100 = vmatmul.f32.gmra.mxu0 %v1079
  %v1101 = vpop.f32.mrf.mxu0
  %v1102 = vadd.f32 %v1072, %v1101
  %1103 = vmatmul.f32.gmra.mxu0 %v1082
  %v1104 = vpop.f32.mrf.mxu0
  %v1105 = vadd.f32 %v1076, %v1104
  %1106 = vdwg.mxu0
  %v1107 = vadd.f32 %v762, %v1102
  %v1108 = vadd.f32 %v763, %v1105
  %v1109 = vmul.f32 %v1107, %v54
  %v1110 = vmul.f32 %v1108, %v54
  %v1111 = vadd.f32 %v1109, %v1110
  %v1112 = vrot.slane %v1111, 4
  %v1113 = vadd.f32 %v1111, %v1112
  %v1114 = vrot.slane %v1113, 2
  %v1115 = vadd.f32 %v1113, %v1114
  %v1116 = vrot.slane %v1115, 1
  %v1117 = vadd.f32 %v1115, %v1116
  %v1118 = vmul.f32 %v1117, %v72
  %v1119 = vsub.f32 %v1109, %v1118
  %v1120 = vsub.f32 %v1110, %v1118
  %v1121 = vmul.f32 %v1119, %v1119
  %v1122 = vmul.f32 %v1120, %v1120
  %v1123 = vadd.f32 %v1121, %v1122
  %v1124 = vrot.slane %v1123, 4
  %v1125 = vadd.f32 %v1123, %v1124
  %v1126 = vrot.slane %v1125, 2
  %v1127 = vadd.f32 %v1125, %v1126
  %v1128 = vrot.slane %v1127, 1
  %v1129 = vadd.f32 %v1127, %v1128
  %v1130 = vmul.f32 %v1129, %v72
  %v1131 = vadd.f32 %v1130, 1e-05
  %v1132 = vrsqrt.pop %v1131
  %v1133 = vmul.f32 %v1132, %v1131
  %v1134 = vmul.f32 %v1133, %v1132
  %v1135 = vmul.f32 0.5, %v1134
  %v1136 = vsub.f32 1.5, %v1135
  %v1137 = vmul.f32 %v1132, %v1136
  %vm1138 = vweird.f32 %v1131
  %vm1139 = vweird.f32 %v1132
  %vm1140 = vmor %vm1138, %vm1139
  %v1141 = vsel %vm1140, %v1132, %v1137
  %v1142 = vmul.f32 %v1119, %v1141
  %v1143 = vmul.f32 %v1120, %v1141
  %1144 = vset.pattern.permute.xlu0 12
  %1145 = vperm.xlu0 %1144, %v55
  %v1146 = vpop.permute.xlu0 %1145
  %1148 = vset.pattern.permute.xlu0 12
  %1149 = vperm.xlu0 %1148, %v56
  %v1150 = vpop.permute.xlu0 %1149
  %v1152 = vmul.f32 %v1142, %v1146
  %v1153 = vmul.f32 %v1143, %v1150
  %1154 = vset.pattern.permute.xlu0 13
  %1155 = vperm.xlu0 %1154, %v55
  %v1156 = vpop.permute.xlu0 %1155
  %1158 = vset.pattern.permute.xlu0 13
  %1159 = vperm.xlu0 %1158, %v56
  %v1160 = vpop.permute.xlu0 %1159
  %v1162 = vadd.f32 %v1152, %v1156
  %v1163 = vadd.f32 %v1153, %v1160
  %s1164 = scalar_lea.vmem %s1, 96
  %v1165 = vld [vmem:[%s1164] sm:$0xff]
  %v1166 = vld [vmem:[%s1164 + $0x8] sm:$0xff]
  %v1167 = vld [vmem:[%s1164 + $0x10] sm:$0xff]
  %v1168 = vld [vmem:[%s1164 + $0x18] sm:$0xff]
  %1169 = vrot.lane.b32.xlu0 %v1162, 2
  %v1170 = vpop.permute.xlu0 %1169
  %1171 = vrot.lane.b32.xlu0 %v1163, 2
  %v1172 = vpop.permute.xlu0 %1171
  %v1173 = vmul.f32 %v1170, %v33
  %v1174 = vmul.f32 %v1172, %v33
  %1175 = vrot.lane.b32.xlu0 %v1162, 126
  %v1176 = vpop.permute.xlu0 %1175
  %1177 = vrot.lane.b32.xlu0 %v1163, 126
  %v1178 = vpop.permute.xlu0 %1177
  %v1179 = vmul.f32 %v1176, %v36
  %v1180 = vmul.f32 %v1178, %v36
  %1181 = vset.pattern.permute.xlu0 14
  %1182 = vperm.xlu0 %1181, %v55
  %v1183 = vpop.permute.xlu0 %1182
  %1185 = vset.pattern.permute.xlu0 14
  %1186 = vperm.xlu0 %1185, %v56
  %v1187 = vpop.permute.xlu0 %1186
  %1189 = vset.pattern.permute.xlu0 14
  %1190 = vperm.xlu0 %1189, %v57
  %v1191 = vpop.permute.xlu0 %1190
  %1193 = vset.pattern.permute.xlu0 14
  %1194 = vperm.xlu0 %1193, %v58
  %v1195 = vpop.permute.xlu0 %1194
  %v1198 = vsel %vm155, %v1165, 0
  %v1201 = vsel %vm155, %v1166, 0
  %v1204 = vsel %vm155, %v1167, 0
  %v1207 = vsel %vm155, %v1168, 0
  %1209 = vmatpush.msra.mxu0 0.0
  %1210 = vmatpush.msra.mxu0 0.0
  %1211 = vmatpush.msra.mxu0 0.0
  %1212 = vmatpush.msra.mxu0 0.0
  %1213 = vmatpush.msra.mxu0 0.0
  %1214 = vmatpush.msra.mxu0 0.0
  %1215 = vmatpush.msra.mxu0 0.0
  %1216 = vmatpush.msra.mxu0 0.0
  %1217 = vmatpush.msra.mxu0 0.0
  %1218 = vmatpush.msra.mxu0 0.0
  %1219 = vmatpush.msra.mxu0 %v1180
  %1220 = vmatpush.msra.mxu0 %v1179
  %1221 = vmatpush.msra.mxu0 %v1163
  %1222 = vmatpush.msra.mxu0 %v1162
  %1223 = vmatpush.msra.mxu0 %v1174
  %1224 = vmatpush.msra.mxu0 %v1173
  %1225 = vmatmul.f32.gmra.mxu0 %v1198
  %v1226 = vpop.f32.mrf.mxu0
  %v1227 = vadd.f32 %v1183, %v1226
  %1228 = vmatmul.f32.gmra.mxu0 %v1201
  %v1229 = vpop.f32.mrf.mxu0
  %v1230 = vadd.f32 %v1187, %v1229
  %1231 = vmatmul.f32.gmra.mxu0 %v1204
  %v1232 = vpop.f32.mrf.mxu0
  %v1233 = vadd.f32 %v1191, %v1232
  %1234 = vmatmul.f32.gmra.mxu0 %v1207
  %v1235 = vpop.f32.mrf.mxu0
  %v1236 = vadd.f32 %v1195, %v1235
  %1237 = vdwg.mxu0
  %v1238 = vmul.f32 %v1227, 0.5
  %v1239 = vmul.f32 %v1230, 0.5
  %v1240 = vmul.f32 %v1233, 0.5
  %v1241 = vmul.f32 %v1236, 0.5
  %v1242 = vmul.f32 %v1227, 0.70710677
  %v1243 = vmul.f32 %v1230, 0.70710677
  %v1244 = vmul.f32 %v1233, 0.70710677
  %v1245 = vmul.f32 %v1236, 0.70710677
  %v1246 = vmul.f32 %v1242, %v1242
  %v1247 = vmin.f32 16.0, %v1246
  %v1248 = vmul.f32 %v1247, 2.1237322e-06
  %v1249 = vadd.f32 %v1248, 0.00028619796
  %v1250 = vmul.f32 %v1247, %v1249
  %v1251 = vadd.f32 %v1250, 0.0036580483
  %v1252 = vmul.f32 %v1247, %v1251
  %v1253 = vadd.f32 %v1252, 0.05243302
  %v1254 = vmul.f32 %v1247, %v1253
  %v1255 = vadd.f32 %v1254, 0.18741608
  %v1256 = vmul.f32 %v1247, %v1255
  %v1257 = vadd.f32 %v1256, 1.1283791
  %v1258 = vmul.f32 %v1242, %v1257
  %v1259 = vmul.f32 %v1247, 3.8918573e-05
  %v1260 = vadd.f32 %v1259, 0.001143296
  %v1261 = vmul.f32 %v1247, %v1260
  %v1262 = vadd.f32 %v1261, 0.014752088
  %v1263 = vmul.f32 %v1247, %v1262
  %v1264 = vadd.f32 %v1263, 0.112945676
  %v1265 = vmul.f32 %v1247, %v1264
  %v1266 = vadd.f32 %v1265, 0.4994258
  %v1267 = vmul.f32 %v1247, %v1266
  %v1268 = vadd.f32 %v1267, 1.0
  %v1269 = vrcp.pop %v1268
  %v1270 = vmul.f32 %v1268, %v1269
  %v1271 = vsub.f32 1.0, %v1270
  %v1272 = vmul.f32 %v1269, %v1271
  %v1273 = vadd.f32 %v1269, %v1272
  %vm1274 = vweird.f32 %v1268
  %vm1275 = vweird.f32 %v1269
  %vm1276 = vmor %vm1274, %vm1275
  %v1277 = vsel %vm1276, %v1269, %v1273
  %v1278 = vand.u32 2147483647, %v1268
  %vm1279 = vcmp.eq.f32.partialorder %v1278, 8.507059e+37
  %v1280 = vand.u32 %v1268, 2147483648
  %v1281 = vor.u32 1.1754944e-38, %v1280
  %v1282 = vsel %vm1279, %v1281, %v1277
  %v1283 = vmul.f32 %v1258, %v1282
  %v1284 = vmin.f32 %v1283, 1.0
  %v1285 = vmax.f32 %v1284, -1.0
  %v1286 = vmul.f32 %v1243, %v1243
  %v1287 = vmin.f32 16.0, %v1286
  %v1288 = vmul.f32 %v1287, 2.1237322e-06
  %v1289 = vadd.f32 %v1288, 0.00028619796
  %v1290 = vmul.f32 %v1287, %v1289
  %v1291 = vadd.f32 %v1290, 0.0036580483
  %v1292 = vmul.f32 %v1287, %v1291
  %v1293 = vadd.f32 %v1292, 0.05243302
  %v1294 = vmul.f32 %v1287, %v1293
  %v1295 = vadd.f32 %v1294, 0.18741608
  %v1296 = vmul.f32 %v1287, %v1295
  %v1297 = vadd.f32 %v1296, 1.1283791
  %v1298 = vmul.f32 %v1243, %v1297
  %v1299 = vmul.f32 %v1287, 3.8918573e-05
  %v1300 = vadd.f32 %v1299, 0.001143296
  %v1301 = vmul.f32 %v1287, %v1300
  %v1302 = vadd.f32 %v1301, 0.014752088
  %v1303 = vmul.f32 %v1287, %v1302
  %v1304 = vadd.f32 %v1303, 0.112945676
  %v1305 = vmul.f32 %v1287, %v1304
  %v1306 = vadd.f32 %v1305, 0.4994258
  %v1307 = vmul.f32 %v1287, %v1306
  %v1308 = vadd.f32 %v1307, 1.0
  %v1309 = vrcp.pop %v1308
  %v1310 = vmul.f32 %v1308, %v1309
  %v1311 = vsub.f32 1.0, %v1310
  %v1312 = vmul.f32 %v1309, %v1311
  %v1313 = vadd.f32 %v1309, %v1312
  %vm1314 = vweird.f32 %v1308
  %vm1315 = vweird.f32 %v1309
  %vm1316 = vmor %vm1314, %vm1315
  %v1317 = vsel %vm1316, %v1309, %v1313
  %v1318 = vand.u32 2147483647, %v1308
  %vm1319 = vcmp.eq.f32.partialorder %v1318, 8.507059e+37
  %v1320 = vand.u32 %v1308, 2147483648
  %v1321 = vor.u32 1.1754944e-38, %v1320
  %v1322 = vsel %vm1319, %v1321, %v1317
  %v1323 = vmul.f32 %v1298, %v1322
  %v1324 = vmin.f32 %v1323, 1.0
  %v1325 = vmax.f32 %v1324, -1.0
  %v1326 = vmul.f32 %v1244, %v1244
  %v1327 = vmin.f32 16.0, %v1326
  %v1328 = vmul.f32 %v1327, 2.1237322e-06
  %v1329 = vadd.f32 %v1328, 0.00028619796
  %v1330 = vmul.f32 %v1327, %v1329
  %v1331 = vadd.f32 %v1330, 0.0036580483
  %v1332 = vmul.f32 %v1327, %v1331
  %v1333 = vadd.f32 %v1332, 0.05243302
  %v1334 = vmul.f32 %v1327, %v1333
  %v1335 = vadd.f32 %v1334, 0.18741608
  %v1336 = vmul.f32 %v1327, %v1335
  %v1337 = vadd.f32 %v1336, 1.1283791
  %v1338 = vmul.f32 %v1244, %v1337
  %v1339 = vmul.f32 %v1327, 3.8918573e-05
  %v1340 = vadd.f32 %v1339, 0.001143296
  %v1341 = vmul.f32 %v1327, %v1340
  %v1342 = vadd.f32 %v1341, 0.014752088
  %v1343 = vmul.f32 %v1327, %v1342
  %v1344 = vadd.f32 %v1343, 0.112945676
  %v1345 = vmul.f32 %v1327, %v1344
  %v1346 = vadd.f32 %v1345, 0.4994258
  %v1347 = vmul.f32 %v1327, %v1346
  %v1348 = vadd.f32 %v1347, 1.0
  %v1349 = vrcp.pop %v1348
  %v1350 = vmul.f32 %v1348, %v1349
  %v1351 = vsub.f32 1.0, %v1350
  %v1352 = vmul.f32 %v1349, %v1351
  %v1353 = vadd.f32 %v1349, %v1352
  %vm1354 = vweird.f32 %v1348
  %vm1355 = vweird.f32 %v1349
  %vm1356 = vmor %vm1354, %vm1355
  %v1357 = vsel %vm1356, %v1349, %v1353
  %v1358 = vand.u32 2147483647, %v1348
  %vm1359 = vcmp.eq.f32.partialorder %v1358, 8.507059e+37
  %v1360 = vand.u32 %v1348, 2147483648
  %v1361 = vor.u32 1.1754944e-38, %v1360
  %v1362 = vsel %vm1359, %v1361, %v1357
  %v1363 = vmul.f32 %v1338, %v1362
  %v1364 = vmin.f32 %v1363, 1.0
  %v1365 = vmax.f32 %v1364, -1.0
  %v1366 = vmul.f32 %v1245, %v1245
  %v1367 = vmin.f32 16.0, %v1366
  %v1368 = vmul.f32 %v1367, 2.1237322e-06
  %v1369 = vadd.f32 %v1368, 0.00028619796
  %v1370 = vmul.f32 %v1367, %v1369
  %v1371 = vadd.f32 %v1370, 0.0036580483
  %v1372 = vmul.f32 %v1367, %v1371
  %v1373 = vadd.f32 %v1372, 0.05243302
  %v1374 = vmul.f32 %v1367, %v1373
  %v1375 = vadd.f32 %v1374, 0.18741608
  %v1376 = vmul.f32 %v1367, %v1375
  %v1377 = vadd.f32 %v1376, 1.1283791
  %v1378 = vmul.f32 %v1245, %v1377
  %v1379 = vmul.f32 %v1367, 3.8918573e-05
  %v1380 = vadd.f32 %v1379, 0.001143296
  %v1381 = vmul.f32 %v1367, %v1380
  %v1382 = vadd.f32 %v1381, 0.014752088
  %v1383 = vmul.f32 %v1367, %v1382
  %v1384 = vadd.f32 %v1383, 0.112945676
  %v1385 = vmul.f32 %v1367, %v1384
  %v1386 = vadd.f32 %v1385, 0.4994258
  %v1387 = vmul.f32 %v1367, %v1386
  %v1388 = vadd.f32 %v1387, 1.0
  %v1389 = vrcp.pop %v1388
  %v1390 = vmul.f32 %v1388, %v1389
  %v1391 = vsub.f32 1.0, %v1390
  %v1392 = vmul.f32 %v1389, %v1391
  %v1393 = vadd.f32 %v1389, %v1392
  %vm1394 = vweird.f32 %v1388
  %vm1395 = vweird.f32 %v1389
  %vm1396 = vmor %vm1394, %vm1395
  %v1397 = vsel %vm1396, %v1389, %v1393
  %v1398 = vand.u32 2147483647, %v1388
  %vm1399 = vcmp.eq.f32.partialorder %v1398, 8.507059e+37
  %v1400 = vand.u32 %v1388, 2147483648
  %v1401 = vor.u32 1.1754944e-38, %v1400
  %v1402 = vsel %vm1399, %v1401, %v1397
  %v1403 = vmul.f32 %v1378, %v1402
  %v1404 = vmin.f32 %v1403, 1.0
  %v1405 = vmax.f32 %v1404, -1.0
  %v1406 = vadd.f32 %v1285, 1.0
  %v1407 = vadd.f32 %v1325, 1.0
  %v1408 = vadd.f32 %v1365, 1.0
  %v1409 = vadd.f32 %v1405, 1.0
  %v1410 = vmul.f32 %v1238, %v1406
  %v1411 = vmul.f32 %v1239, %v1407
  %v1412 = vmul.f32 %v1240, %v1408
  %v1413 = vmul.f32 %v1241, %v1409
  %s1414 = scalar_lea.vmem %s2, 48
  %v1415 = vld [vmem:[%s1414] sm:$0xff]
  %v1416 = vld [vmem:[%s1414 + $0x8] sm:$0xff]
  %1417 = vset.pattern.permute.xlu0 15
  %1418 = vperm.xlu0 %1417, %v55
  %v1419 = vpop.permute.xlu0 %1418
  %1421 = vset.pattern.permute.xlu0 15
  %1422 = vperm.xlu0 %1421, %v56
  %v1423 = vpop.permute.xlu0 %1422
  %v1426 = vsel %vm383, %v1415, 0
  %v1429 = vsel %vm383, %v1416, 0
  %1431 = vmatpush.msra.mxu0 0.0
  %1432 = vmatpush.msra.mxu0 0.0
  %1433 = vmatpush.msra.mxu0 0.0
  %1434 = vmatpush.msra.mxu0 0.0
  %1435 = vmatpush.msra.mxu0 0.0
  %1436 = vmatpush.msra.mxu0 0.0
  %1437 = vmatpush.msra.mxu0 0.0
  %1438 = vmatpush.msra.mxu0 0.0
  %1439 = vmatpush.msra.mxu0 0.0
  %1440 = vmatpush.msra.mxu0 0.0
  %1441 = vmatpush.msra.mxu0 0.0
  %1442 = vmatpush.msra.mxu0 0.0
  %1443 = vmatpush.msra.mxu0 %v1413
  %1444 = vmatpush.msra.mxu0 %v1412
  %1445 = vmatpush.msra.mxu0 %v1411
  %1446 = vmatpush.msra.mxu0 %v1410
  %1447 = vmatmul.f32.gmra.mxu0 %v1426
  %v1448 = vpop.f32.mrf.mxu0
  %v1449 = vadd.f32 %v1419, %v1448
  %1450 = vmatmul.f32.gmra.mxu0 %v1429
  %v1451 = vpop.f32.mrf.mxu0
  %v1452 = vadd.f32 %v1423, %v1451
  %1453 = vdwg.mxu0
  %v1454 = vadd.f32 %v1109, %v1449
  %v1455 = vadd.f32 %v1110, %v1452
  %v1456 = vmul.f32 %v1454, %v54
  %v1457 = vmul.f32 %v1455, %v54
  %v1458 = vadd.f32 %v1456, %v1457
  %v1459 = vrot.slane %v1458, 4
  %v1460 = vadd.f32 %v1458, %v1459
  %v1461 = vrot.slane %v1460, 2
  %v1462 = vadd.f32 %v1460, %v1461
  %v1463 = vrot.slane %v1462, 1
  %v1464 = vadd.f32 %v1462, %v1463
  %v1465 = vmul.f32 %v1464, %v72
  %v1466 = vsub.f32 %v1456, %v1465
  %v1467 = vsub.f32 %v1457, %v1465
  %v1468 = vmul.f32 %v1466, %v1466
  %v1469 = vmul.f32 %v1467, %v1467
  %v1470 = vadd.f32 %v1468, %v1469
  %v1471 = vrot.slane %v1470, 4
  %v1472 = vadd.f32 %v1470, %v1471
  %v1473 = vrot.slane %v1472, 2
  %v1474 = vadd.f32 %v1472, %v1473
  %v1475 = vrot.slane %v1474, 1
  %v1476 = vadd.f32 %v1474, %v1475
  %v1477 = vmul.f32 %v1476, %v72
  %v1478 = vadd.f32 %v1477, 1e-05
  %v1479 = vrsqrt.pop %v1478
  %v1480 = vmul.f32 %v1479, %v1478
  %v1481 = vmul.f32 %v1480, %v1479
  %v1482 = vmul.f32 0.5, %v1481
  %v1483 = vsub.f32 1.5, %v1482
  %v1484 = vmul.f32 %v1479, %v1483
  %vm1485 = vweird.f32 %v1478
  %vm1486 = vweird.f32 %v1479
  %vm1487 = vmor %vm1485, %vm1486
  %v1488 = vsel %vm1487, %v1479, %v1484
  %v1489 = vmul.f32 %v1466, %v1488
  %v1490 = vmul.f32 %v1467, %v1488
  %1491 = vset.pattern.permute.xlu0 16
  %1492 = vperm.xlu0 %1491, %v55
  %v1493 = vpop.permute.xlu0 %1492
  %1495 = vset.pattern.permute.xlu0 16
  %1496 = vperm.xlu0 %1495, %v56
  %v1497 = vpop.permute.xlu0 %1496
  %v1499 = vmul.f32 %v1489, %v1493
  %v1500 = vmul.f32 %v1490, %v1497
  %1501 = vset.pattern.permute.xlu0 17
  %1502 = vperm.xlu0 %1501, %v55
  %v1503 = vpop.permute.xlu0 %1502
  %1505 = vset.pattern.permute.xlu0 17
  %1506 = vperm.xlu0 %1505, %v56
  %v1507 = vpop.permute.xlu0 %1506
  %v1509 = vadd.f32 %v1499, %v1503
  %v1510 = vadd.f32 %v1500, %v1507
  %s1511 = scalar_lea.vmem %s1, 128
  %v1512 = vld [vmem:[%s1511] sm:$0xff]
  %v1513 = vld [vmem:[%s1511 + $0x8] sm:$0xff]
  %v1514 = vld [vmem:[%s1511 + $0x10] sm:$0xff]
  %v1515 = vld [vmem:[%s1511 + $0x18] sm:$0xff]
  %1516 = vrot.lane.b32.xlu0 %v1509, 4
  %v1517 = vpop.permute.xlu0 %1516
  %1518 = vrot.lane.b32.xlu0 %v1510, 4
  %v1519 = vpop.permute.xlu0 %1518
  %v1520 = vmul.f32 %v1517, %v39
  %v1521 = vmul.f32 %v1519, %v39
  %1522 = vrot.lane.b32.xlu0 %v1509, 124
  %v1523 = vpop.permute.xlu0 %1522
  %1524 = vrot.lane.b32.xlu0 %v1510, 124
  %v1525 = vpop.permute.xlu0 %1524
  %v1526 = vmul.f32 %v1523, %v42
  %v1527 = vmul.f32 %v1525, %v42
  %1528 = vset.pattern.permute.xlu0 18
  %1529 = vperm.xlu0 %1528, %v55
  %v1530 = vpop.permute.xlu0 %1529
  %1532 = vset.pattern.permute.xlu0 18
  %1533 = vperm.xlu0 %1532, %v56
  %v1534 = vpop.permute.xlu0 %1533
  %1536 = vset.pattern.permute.xlu0 18
  %1537 = vperm.xlu0 %1536, %v57
  %v1538 = vpop.permute.xlu0 %1537
  %1540 = vset.pattern.permute.xlu0 18
  %1541 = vperm.xlu0 %1540, %v58
  %v1542 = vpop.permute.xlu0 %1541
  %v1545 = vsel %vm155, %v1512, 0
  %v1548 = vsel %vm155, %v1513, 0
  %v1551 = vsel %vm155, %v1514, 0
  %v1554 = vsel %vm155, %v1515, 0
  %1556 = vmatpush.msra.mxu0 0.0
  %1557 = vmatpush.msra.mxu0 0.0
  %1558 = vmatpush.msra.mxu0 0.0
  %1559 = vmatpush.msra.mxu0 0.0
  %1560 = vmatpush.msra.mxu0 0.0
  %1561 = vmatpush.msra.mxu0 0.0
  %1562 = vmatpush.msra.mxu0 0.0
  %1563 = vmatpush.msra.mxu0 0.0
  %1564 = vmatpush.msra.mxu0 0.0
  %1565 = vmatpush.msra.mxu0 0.0
  %1566 = vmatpush.msra.mxu0 %v1527
  %1567 = vmatpush.msra.mxu0 %v1526
  %1568 = vmatpush.msra.mxu0 %v1510
  %1569 = vmatpush.msra.mxu0 %v1509
  %1570 = vmatpush.msra.mxu0 %v1521
  %1571 = vmatpush.msra.mxu0 %v1520
  %1572 = vmatmul.f32.gmra.mxu0 %v1545
  %v1573 = vpop.f32.mrf.mxu0
  %v1574 = vadd.f32 %v1530, %v1573
  %1575 = vmatmul.f32.gmra.mxu0 %v1548
  %v1576 = vpop.f32.mrf.mxu0
  %v1577 = vadd.f32 %v1534, %v1576
  %1578 = vmatmul.f32.gmra.mxu0 %v1551
  %v1579 = vpop.f32.mrf.mxu0
  %v1580 = vadd.f32 %v1538, %v1579
  %1581 = vmatmul.f32.gmra.mxu0 %v1554
  %v1582 = vpop.f32.mrf.mxu0
  %v1583 = vadd.f32 %v1542, %v1582
  %1584 = vdwg.mxu0
  %v1585 = vmul.f32 %v1574, 0.5
  %v1586 = vmul.f32 %v1577, 0.5
  %v1587 = vmul.f32 %v1580, 0.5
  %v1588 = vmul.f32 %v1583, 0.5
  %v1589 = vmul.f32 %v1574, 0.70710677
  %v1590 = vmul.f32 %v1577, 0.70710677
  %v1591 = vmul.f32 %v1580, 0.70710677
  %v1592 = vmul.f32 %v1583, 0.70710677
  %v1593 = vmul.f32 %v1589, %v1589
  %v1594 = vmin.f32 16.0, %v1593
  %v1595 = vmul.f32 %v1594, 2.1237322e-06
  %v1596 = vadd.f32 %v1595, 0.00028619796
  %v1597 = vmul.f32 %v1594, %v1596
  %v1598 = vadd.f32 %v1597, 0.0036580483
  %v1599 = vmul.f32 %v1594, %v1598
  %v1600 = vadd.f32 %v1599, 0.05243302
  %v1601 = vmul.f32 %v1594, %v1600
  %v1602 = vadd.f32 %v1601, 0.18741608
  %v1603 = vmul.f32 %v1594, %v1602
  %v1604 = vadd.f32 %v1603, 1.1283791
  %v1605 = vmul.f32 %v1589, %v1604
  %v1606 = vmul.f32 %v1594, 3.8918573e-05
  %v1607 = vadd.f32 %v1606, 0.001143296
  %v1608 = vmul.f32 %v1594, %v1607
  %v1609 = vadd.f32 %v1608, 0.014752088
  %v1610 = vmul.f32 %v1594, %v1609
  %v1611 = vadd.f32 %v1610, 0.112945676
  %v1612 = vmul.f32 %v1594, %v1611
  %v1613 = vadd.f32 %v1612, 0.4994258
  %v1614 = vmul.f32 %v1594, %v1613
  %v1615 = vadd.f32 %v1614, 1.0
  %v1616 = vrcp.pop %v1615
  %v1617 = vmul.f32 %v1615, %v1616
  %v1618 = vsub.f32 1.0, %v1617
  %v1619 = vmul.f32 %v1616, %v1618
  %v1620 = vadd.f32 %v1616, %v1619
  %vm1621 = vweird.f32 %v1615
  %vm1622 = vweird.f32 %v1616
  %vm1623 = vmor %vm1621, %vm1622
  %v1624 = vsel %vm1623, %v1616, %v1620
  %v1625 = vand.u32 2147483647, %v1615
  %vm1626 = vcmp.eq.f32.partialorder %v1625, 8.507059e+37
  %v1627 = vand.u32 %v1615, 2147483648
  %v1628 = vor.u32 1.1754944e-38, %v1627
  %v1629 = vsel %vm1626, %v1628, %v1624
  %v1630 = vmul.f32 %v1605, %v1629
  %v1631 = vmin.f32 %v1630, 1.0
  %v1632 = vmax.f32 %v1631, -1.0
  %v1633 = vmul.f32 %v1590, %v1590
  %v1634 = vmin.f32 16.0, %v1633
  %v1635 = vmul.f32 %v1634, 2.1237322e-06
  %v1636 = vadd.f32 %v1635, 0.00028619796
  %v1637 = vmul.f32 %v1634, %v1636
  %v1638 = vadd.f32 %v1637, 0.0036580483
  %v1639 = vmul.f32 %v1634, %v1638
  %v1640 = vadd.f32 %v1639, 0.05243302
  %v1641 = vmul.f32 %v1634, %v1640
  %v1642 = vadd.f32 %v1641, 0.18741608
  %v1643 = vmul.f32 %v1634, %v1642
  %v1644 = vadd.f32 %v1643, 1.1283791
  %v1645 = vmul.f32 %v1590, %v1644
  %v1646 = vmul.f32 %v1634, 3.8918573e-05
  %v1647 = vadd.f32 %v1646, 0.001143296
  %v1648 = vmul.f32 %v1634, %v1647
  %v1649 = vadd.f32 %v1648, 0.014752088
  %v1650 = vmul.f32 %v1634, %v1649
  %v1651 = vadd.f32 %v1650, 0.112945676
  %v1652 = vmul.f32 %v1634, %v1651
  %v1653 = vadd.f32 %v1652, 0.4994258
  %v1654 = vmul.f32 %v1634, %v1653
  %v1655 = vadd.f32 %v1654, 1.0
  %v1656 = vrcp.pop %v1655
  %v1657 = vmul.f32 %v1655, %v1656
  %v1658 = vsub.f32 1.0, %v1657
  %v1659 = vmul.f32 %v1656, %v1658
  %v1660 = vadd.f32 %v1656, %v1659
  %vm1661 = vweird.f32 %v1655
  %vm1662 = vweird.f32 %v1656
  %vm1663 = vmor %vm1661, %vm1662
  %v1664 = vsel %vm1663, %v1656, %v1660
  %v1665 = vand.u32 2147483647, %v1655
  %vm1666 = vcmp.eq.f32.partialorder %v1665, 8.507059e+37
  %v1667 = vand.u32 %v1655, 2147483648
  %v1668 = vor.u32 1.1754944e-38, %v1667
  %v1669 = vsel %vm1666, %v1668, %v1664
  %v1670 = vmul.f32 %v1645, %v1669
  %v1671 = vmin.f32 %v1670, 1.0
  %v1672 = vmax.f32 %v1671, -1.0
  %v1673 = vmul.f32 %v1591, %v1591
  %v1674 = vmin.f32 16.0, %v1673
  %v1675 = vmul.f32 %v1674, 2.1237322e-06
  %v1676 = vadd.f32 %v1675, 0.00028619796
  %v1677 = vmul.f32 %v1674, %v1676
  %v1678 = vadd.f32 %v1677, 0.0036580483
  %v1679 = vmul.f32 %v1674, %v1678
  %v1680 = vadd.f32 %v1679, 0.05243302
  %v1681 = vmul.f32 %v1674, %v1680
  %v1682 = vadd.f32 %v1681, 0.18741608
  %v1683 = vmul.f32 %v1674, %v1682
  %v1684 = vadd.f32 %v1683, 1.1283791
  %v1685 = vmul.f32 %v1591, %v1684
  %v1686 = vmul.f32 %v1674, 3.8918573e-05
  %v1687 = vadd.f32 %v1686, 0.001143296
  %v1688 = vmul.f32 %v1674, %v1687
  %v1689 = vadd.f32 %v1688, 0.014752088
  %v1690 = vmul.f32 %v1674, %v1689
  %v1691 = vadd.f32 %v1690, 0.112945676
  %v1692 = vmul.f32 %v1674, %v1691
  %v1693 = vadd.f32 %v1692, 0.4994258
  %v1694 = vmul.f32 %v1674, %v1693
  %v1695 = vadd.f32 %v1694, 1.0
  %v1696 = vrcp.pop %v1695
  %v1697 = vmul.f32 %v1695, %v1696
  %v1698 = vsub.f32 1.0, %v1697
  %v1699 = vmul.f32 %v1696, %v1698
  %v1700 = vadd.f32 %v1696, %v1699
  %vm1701 = vweird.f32 %v1695
  %vm1702 = vweird.f32 %v1696
  %vm1703 = vmor %vm1701, %vm1702
  %v1704 = vsel %vm1703, %v1696, %v1700
  %v1705 = vand.u32 2147483647, %v1695
  %vm1706 = vcmp.eq.f32.partialorder %v1705, 8.507059e+37
  %v1707 = vand.u32 %v1695, 2147483648
  %v1708 = vor.u32 1.1754944e-38, %v1707
  %v1709 = vsel %vm1706, %v1708, %v1704
  %v1710 = vmul.f32 %v1685, %v1709
  %v1711 = vmin.f32 %v1710, 1.0
  %v1712 = vmax.f32 %v1711, -1.0
  %v1713 = vmul.f32 %v1592, %v1592
  %v1714 = vmin.f32 16.0, %v1713
  %v1715 = vmul.f32 %v1714, 2.1237322e-06
  %v1716 = vadd.f32 %v1715, 0.00028619796
  %v1717 = vmul.f32 %v1714, %v1716
  %v1718 = vadd.f32 %v1717, 0.0036580483
  %v1719 = vmul.f32 %v1714, %v1718
  %v1720 = vadd.f32 %v1719, 0.05243302
  %v1721 = vmul.f32 %v1714, %v1720
  %v1722 = vadd.f32 %v1721, 0.18741608
  %v1723 = vmul.f32 %v1714, %v1722
  %v1724 = vadd.f32 %v1723, 1.1283791
  %v1725 = vmul.f32 %v1592, %v1724
  %v1726 = vmul.f32 %v1714, 3.8918573e-05
  %v1727 = vadd.f32 %v1726, 0.001143296
  %v1728 = vmul.f32 %v1714, %v1727
  %v1729 = vadd.f32 %v1728, 0.014752088
  %v1730 = vmul.f32 %v1714, %v1729
  %v1731 = vadd.f32 %v1730, 0.112945676
  %v1732 = vmul.f32 %v1714, %v1731
  %v1733 = vadd.f32 %v1732, 0.4994258
  %v1734 = vmul.f32 %v1714, %v1733
  %v1735 = vadd.f32 %v1734, 1.0
  %v1736 = vrcp.pop %v1735
  %v1737 = vmul.f32 %v1735, %v1736
  %v1738 = vsub.f32 1.0, %v1737
  %v1739 = vmul.f32 %v1736, %v1738
  %v1740 = vadd.f32 %v1736, %v1739
  %vm1741 = vweird.f32 %v1735
  %vm1742 = vweird.f32 %v1736
  %vm1743 = vmor %vm1741, %vm1742
  %v1744 = vsel %vm1743, %v1736, %v1740
  %v1745 = vand.u32 2147483647, %v1735
  %vm1746 = vcmp.eq.f32.partialorder %v1745, 8.507059e+37
  %v1747 = vand.u32 %v1735, 2147483648
  %v1748 = vor.u32 1.1754944e-38, %v1747
  %v1749 = vsel %vm1746, %v1748, %v1744
  %v1750 = vmul.f32 %v1725, %v1749
  %v1751 = vmin.f32 %v1750, 1.0
  %v1752 = vmax.f32 %v1751, -1.0
  %v1753 = vadd.f32 %v1632, 1.0
  %v1754 = vadd.f32 %v1672, 1.0
  %v1755 = vadd.f32 %v1712, 1.0
  %v1756 = vadd.f32 %v1752, 1.0
  %v1757 = vmul.f32 %v1585, %v1753
  %v1758 = vmul.f32 %v1586, %v1754
  %v1759 = vmul.f32 %v1587, %v1755
  %v1760 = vmul.f32 %v1588, %v1756
  %s1761 = scalar_lea.vmem %s2, 64
  %v1762 = vld [vmem:[%s1761] sm:$0xff]
  %v1763 = vld [vmem:[%s1761 + $0x8] sm:$0xff]
  %1764 = vset.pattern.permute.xlu0 19
  %1765 = vperm.xlu0 %1764, %v55
  %v1766 = vpop.permute.xlu0 %1765
  %1768 = vset.pattern.permute.xlu0 19
  %1769 = vperm.xlu0 %1768, %v56
  %v1770 = vpop.permute.xlu0 %1769
  %v1773 = vsel %vm383, %v1762, 0
  %v1776 = vsel %vm383, %v1763, 0
  %1778 = vmatpush.msra.mxu0 0.0
  %1779 = vmatpush.msra.mxu0 0.0
  %1780 = vmatpush.msra.mxu0 0.0
  %1781 = vmatpush.msra.mxu0 0.0
  %1782 = vmatpush.msra.mxu0 0.0
  %1783 = vmatpush.msra.mxu0 0.0
  %1784 = vmatpush.msra.mxu0 0.0
  %1785 = vmatpush.msra.mxu0 0.0
  %1786 = vmatpush.msra.mxu0 0.0
  %1787 = vmatpush.msra.mxu0 0.0
  %1788 = vmatpush.msra.mxu0 0.0
  %1789 = vmatpush.msra.mxu0 0.0
  %1790 = vmatpush.msra.mxu0 %v1760
  %1791 = vmatpush.msra.mxu0 %v1759
  %1792 = vmatpush.msra.mxu0 %v1758
  %1793 = vmatpush.msra.mxu0 %v1757
  %1794 = vmatmul.f32.gmra.mxu0 %v1773
  %v1795 = vpop.f32.mrf.mxu0
  %v1796 = vadd.f32 %v1766, %v1795
  %1797 = vmatmul.f32.gmra.mxu0 %v1776
  %v1798 = vpop.f32.mrf.mxu0
  %v1799 = vadd.f32 %v1770, %v1798
  %1800 = vdwg.mxu0
  %v1801 = vadd.f32 %v1456, %v1796
  %v1802 = vadd.f32 %v1457, %v1799
  %v1803 = vmul.f32 %v1801, %v54
  %v1804 = vmul.f32 %v1802, %v54
  %v1805 = vadd.f32 %v1803, %v1804
  %v1806 = vrot.slane %v1805, 4
  %v1807 = vadd.f32 %v1805, %v1806
  %v1808 = vrot.slane %v1807, 2
  %v1809 = vadd.f32 %v1807, %v1808
  %v1810 = vrot.slane %v1809, 1
  %v1811 = vadd.f32 %v1809, %v1810
  %v1812 = vmul.f32 %v1811, %v72
  %v1813 = vsub.f32 %v1803, %v1812
  %v1814 = vsub.f32 %v1804, %v1812
  %v1815 = vmul.f32 %v1813, %v1813
  %v1816 = vmul.f32 %v1814, %v1814
  %v1817 = vadd.f32 %v1815, %v1816
  %v1818 = vrot.slane %v1817, 4
  %v1819 = vadd.f32 %v1817, %v1818
  %v1820 = vrot.slane %v1819, 2
  %v1821 = vadd.f32 %v1819, %v1820
  %v1822 = vrot.slane %v1821, 1
  %v1823 = vadd.f32 %v1821, %v1822
  %v1824 = vmul.f32 %v1823, %v72
  %v1825 = vadd.f32 %v1824, 1e-05
  %v1826 = vrsqrt.pop %v1825
  %v1827 = vmul.f32 %v1826, %v1825
  %v1828 = vmul.f32 %v1827, %v1826
  %v1829 = vmul.f32 0.5, %v1828
  %v1830 = vsub.f32 1.5, %v1829
  %v1831 = vmul.f32 %v1826, %v1830
  %vm1832 = vweird.f32 %v1825
  %vm1833 = vweird.f32 %v1826
  %vm1834 = vmor %vm1832, %vm1833
  %v1835 = vsel %vm1834, %v1826, %v1831
  %v1836 = vmul.f32 %v1813, %v1835
  %v1837 = vmul.f32 %v1814, %v1835
  %1838 = vset.pattern.permute.xlu0 20
  %1839 = vperm.xlu0 %1838, %v55
  %v1840 = vpop.permute.xlu0 %1839
  %1842 = vset.pattern.permute.xlu0 20
  %1843 = vperm.xlu0 %1842, %v56
  %v1844 = vpop.permute.xlu0 %1843
  %v1846 = vmul.f32 %v1836, %v1840
  %v1847 = vmul.f32 %v1837, %v1844
  %1848 = vset.pattern.permute.xlu0 21
  %1849 = vperm.xlu0 %1848, %v55
  %v1850 = vpop.permute.xlu0 %1849
  %1852 = vset.pattern.permute.xlu0 21
  %1853 = vperm.xlu0 %1852, %v56
  %v1854 = vpop.permute.xlu0 %1853
  %v1856 = vadd.f32 %v1846, %v1850
  %v1857 = vadd.f32 %v1847, %v1854
  %s1858 = scalar_lea.vmem %s1, 160
  %v1859 = vld [vmem:[%s1858] sm:$0xff]
  %v1860 = vld [vmem:[%s1858 + $0x8] sm:$0xff]
  %v1861 = vld [vmem:[%s1858 + $0x10] sm:$0xff]
  %v1862 = vld [vmem:[%s1858 + $0x18] sm:$0xff]
  %1863 = vrot.lane.b32.xlu0 %v1856, 4
  %v1864 = vpop.permute.xlu0 %1863
  %1865 = vrot.lane.b32.xlu0 %v1857, 4
  %v1866 = vpop.permute.xlu0 %1865
  %v1867 = vmul.f32 %v1864, %v39
  %v1868 = vmul.f32 %v1866, %v39
  %1869 = vrot.lane.b32.xlu0 %v1856, 124
  %v1870 = vpop.permute.xlu0 %1869
  %1871 = vrot.lane.b32.xlu0 %v1857, 124
  %v1872 = vpop.permute.xlu0 %1871
  %v1873 = vmul.f32 %v1870, %v42
  %v1874 = vmul.f32 %v1872, %v42
  %1875 = vset.pattern.permute.xlu0 22
  %1876 = vperm.xlu0 %1875, %v55
  %v1877 = vpop.permute.xlu0 %1876
  %1879 = vset.pattern.permute.xlu0 22
  %1880 = vperm.xlu0 %1879, %v56
  %v1881 = vpop.permute.xlu0 %1880
  %1883 = vset.pattern.permute.xlu0 22
  %1884 = vperm.xlu0 %1883, %v57
  %v1885 = vpop.permute.xlu0 %1884
  %1887 = vset.pattern.permute.xlu0 22
  %1888 = vperm.xlu0 %1887, %v58
  %v1889 = vpop.permute.xlu0 %1888
  %v1892 = vsel %vm155, %v1859, 0
  %v1895 = vsel %vm155, %v1860, 0
  %v1898 = vsel %vm155, %v1861, 0
  %v1901 = vsel %vm155, %v1862, 0
  %1903 = vmatpush.msra.mxu0 0.0
  %1904 = vmatpush.msra.mxu0 0.0
  %1905 = vmatpush.msra.mxu0 0.0
  %1906 = vmatpush.msra.mxu0 0.0
  %1907 = vmatpush.msra.mxu0 0.0
  %1908 = vmatpush.msra.mxu0 0.0
  %1909 = vmatpush.msra.mxu0 0.0
  %1910 = vmatpush.msra.mxu0 0.0
  %1911 = vmatpush.msra.mxu0 0.0
  %1912 = vmatpush.msra.mxu0 0.0
  %1913 = vmatpush.msra.mxu0 %v1874
  %1914 = vmatpush.msra.mxu0 %v1873
  %1915 = vmatpush.msra.mxu0 %v1857
  %1916 = vmatpush.msra.mxu0 %v1856
  %1917 = vmatpush.msra.mxu0 %v1868
  %1918 = vmatpush.msra.mxu0 %v1867
  %1919 = vmatmul.f32.gmra.mxu0 %v1892
  %v1920 = vpop.f32.mrf.mxu0
  %v1921 = vadd.f32 %v1877, %v1920
  %1922 = vmatmul.f32.gmra.mxu0 %v1895
  %v1923 = vpop.f32.mrf.mxu0
  %v1924 = vadd.f32 %v1881, %v1923
  %1925 = vmatmul.f32.gmra.mxu0 %v1898
  %v1926 = vpop.f32.mrf.mxu0
  %v1927 = vadd.f32 %v1885, %v1926
  %1928 = vmatmul.f32.gmra.mxu0 %v1901
  %v1929 = vpop.f32.mrf.mxu0
  %v1930 = vadd.f32 %v1889, %v1929
  %1931 = vdwg.mxu0
  %v1932 = vmul.f32 %v1921, 0.5
  %v1933 = vmul.f32 %v1924, 0.5
  %v1934 = vmul.f32 %v1927, 0.5
  %v1935 = vmul.f32 %v1930, 0.5
  %v1936 = vmul.f32 %v1921, 0.70710677
  %v1937 = vmul.f32 %v1924, 0.70710677
  %v1938 = vmul.f32 %v1927, 0.70710677
  %v1939 = vmul.f32 %v1930, 0.70710677
  %v1940 = vmul.f32 %v1936, %v1936
  %v1941 = vmin.f32 16.0, %v1940
  %v1942 = vmul.f32 %v1941, 2.1237322e-06
  %v1943 = vadd.f32 %v1942, 0.00028619796
  %v1944 = vmul.f32 %v1941, %v1943
  %v1945 = vadd.f32 %v1944, 0.0036580483
  %v1946 = vmul.f32 %v1941, %v1945
  %v1947 = vadd.f32 %v1946, 0.05243302
  %v1948 = vmul.f32 %v1941, %v1947
  %v1949 = vadd.f32 %v1948, 0.18741608
  %v1950 = vmul.f32 %v1941, %v1949
  %v1951 = vadd.f32 %v1950, 1.1283791
  %v1952 = vmul.f32 %v1936, %v1951
  %v1953 = vmul.f32 %v1941, 3.8918573e-05
  %v1954 = vadd.f32 %v1953, 0.001143296
  %v1955 = vmul.f32 %v1941, %v1954
  %v1956 = vadd.f32 %v1955, 0.014752088
  %v1957 = vmul.f32 %v1941, %v1956
  %v1958 = vadd.f32 %v1957, 0.112945676
  %v1959 = vmul.f32 %v1941, %v1958
  %v1960 = vadd.f32 %v1959, 0.4994258
  %v1961 = vmul.f32 %v1941, %v1960
  %v1962 = vadd.f32 %v1961, 1.0
  %v1963 = vrcp.pop %v1962
  %v1964 = vmul.f32 %v1962, %v1963
  %v1965 = vsub.f32 1.0, %v1964
  %v1966 = vmul.f32 %v1963, %v1965
  %v1967 = vadd.f32 %v1963, %v1966
  %vm1968 = vweird.f32 %v1962
  %vm1969 = vweird.f32 %v1963
  %vm1970 = vmor %vm1968, %vm1969
  %v1971 = vsel %vm1970, %v1963, %v1967
  %v1972 = vand.u32 2147483647, %v1962
  %vm1973 = vcmp.eq.f32.partialorder %v1972, 8.507059e+37
  %v1974 = vand.u32 %v1962, 2147483648
  %v1975 = vor.u32 1.1754944e-38, %v1974
  %v1976 = vsel %vm1973, %v1975, %v1971
  %v1977 = vmul.f32 %v1952, %v1976
  %v1978 = vmin.f32 %v1977, 1.0
  %v1979 = vmax.f32 %v1978, -1.0
  %v1980 = vmul.f32 %v1937, %v1937
  %v1981 = vmin.f32 16.0, %v1980
  %v1982 = vmul.f32 %v1981, 2.1237322e-06
  %v1983 = vadd.f32 %v1982, 0.00028619796
  %v1984 = vmul.f32 %v1981, %v1983
  %v1985 = vadd.f32 %v1984, 0.0036580483
  %v1986 = vmul.f32 %v1981, %v1985
  %v1987 = vadd.f32 %v1986, 0.05243302
  %v1988 = vmul.f32 %v1981, %v1987
  %v1989 = vadd.f32 %v1988, 0.18741608
  %v1990 = vmul.f32 %v1981, %v1989
  %v1991 = vadd.f32 %v1990, 1.1283791
  %v1992 = vmul.f32 %v1937, %v1991
  %v1993 = vmul.f32 %v1981, 3.8918573e-05
  %v1994 = vadd.f32 %v1993, 0.001143296
  %v1995 = vmul.f32 %v1981, %v1994
  %v1996 = vadd.f32 %v1995, 0.014752088
  %v1997 = vmul.f32 %v1981, %v1996
  %v1998 = vadd.f32 %v1997, 0.112945676
  %v1999 = vmul.f32 %v1981, %v1998
  %v2000 = vadd.f32 %v1999, 0.4994258
  %v2001 = vmul.f32 %v1981, %v2000
  %v2002 = vadd.f32 %v2001, 1.0
  %v2003 = vrcp.pop %v2002
  %v2004 = vmul.f32 %v2002, %v2003
  %v2005 = vsub.f32 1.0, %v2004
  %v2006 = vmul.f32 %v2003, %v2005
  %v2007 = vadd.f32 %v2003, %v2006
  %vm2008 = vweird.f32 %v2002
  %vm2009 = vweird.f32 %v2003
  %vm2010 = vmor %vm2008, %vm2009
  %v2011 = vsel %vm2010, %v2003, %v2007
  %v2012 = vand.u32 2147483647, %v2002
  %vm2013 = vcmp.eq.f32.partialorder %v2012, 8.507059e+37
  %v2014 = vand.u32 %v2002, 2147483648
  %v2015 = vor.u32 1.1754944e-38, %v2014
  %v2016 = vsel %vm2013, %v2015, %v2011
  %v2017 = vmul.f32 %v1992, %v2016
  %v2018 = vmin.f32 %v2017, 1.0
  %v2019 = vmax.f32 %v2018, -1.0
  %v2020 = vmul.f32 %v1938, %v1938
  %v2021 = vmin.f32 16.0, %v2020
  %v2022 = vmul.f32 %v2021, 2.1237322e-06
  %v2023 = vadd.f32 %v2022, 0.00028619796
  %v2024 = vmul.f32 %v2021, %v2023
  %v2025 = vadd.f32 %v2024, 0.0036580483
  %v2026 = vmul.f32 %v2021, %v2025
  %v2027 = vadd.f32 %v2026, 0.05243302
  %v2028 = vmul.f32 %v2021, %v2027
  %v2029 = vadd.f32 %v2028, 0.18741608
  %v2030 = vmul.f32 %v2021, %v2029
  %v2031 = vadd.f32 %v2030, 1.1283791
  %v2032 = vmul.f32 %v1938, %v2031
  %v2033 = vmul.f32 %v2021, 3.8918573e-05
  %v2034 = vadd.f32 %v2033, 0.001143296
  %v2035 = vmul.f32 %v2021, %v2034
  %v2036 = vadd.f32 %v2035, 0.014752088
  %v2037 = vmul.f32 %v2021, %v2036
  %v2038 = vadd.f32 %v2037, 0.112945676
  %v2039 = vmul.f32 %v2021, %v2038
  %v2040 = vadd.f32 %v2039, 0.4994258
  %v2041 = vmul.f32 %v2021, %v2040
  %v2042 = vadd.f32 %v2041, 1.0
  %v2043 = vrcp.pop %v2042
  %v2044 = vmul.f32 %v2042, %v2043
  %v2045 = vsub.f32 1.0, %v2044
  %v2046 = vmul.f32 %v2043, %v2045
  %v2047 = vadd.f32 %v2043, %v2046
  %vm2048 = vweird.f32 %v2042
  %vm2049 = vweird.f32 %v2043
  %vm2050 = vmor %vm2048, %vm2049
  %v2051 = vsel %vm2050, %v2043, %v2047
  %v2052 = vand.u32 2147483647, %v2042
  %vm2053 = vcmp.eq.f32.partialorder %v2052, 8.507059e+37
  %v2054 = vand.u32 %v2042, 2147483648
  %v2055 = vor.u32 1.1754944e-38, %v2054
  %v2056 = vsel %vm2053, %v2055, %v2051
  %v2057 = vmul.f32 %v2032, %v2056
  %v2058 = vmin.f32 %v2057, 1.0
  %v2059 = vmax.f32 %v2058, -1.0
  %v2060 = vmul.f32 %v1939, %v1939
  %v2061 = vmin.f32 16.0, %v2060
  %v2062 = vmul.f32 %v2061, 2.1237322e-06
  %v2063 = vadd.f32 %v2062, 0.00028619796
  %v2064 = vmul.f32 %v2061, %v2063
  %v2065 = vadd.f32 %v2064, 0.0036580483
  %v2066 = vmul.f32 %v2061, %v2065
  %v2067 = vadd.f32 %v2066, 0.05243302
  %v2068 = vmul.f32 %v2061, %v2067
  %v2069 = vadd.f32 %v2068, 0.18741608
  %v2070 = vmul.f32 %v2061, %v2069
  %v2071 = vadd.f32 %v2070, 1.1283791
  %v2072 = vmul.f32 %v1939, %v2071
  %v2073 = vmul.f32 %v2061, 3.8918573e-05
  %v2074 = vadd.f32 %v2073, 0.001143296
  %v2075 = vmul.f32 %v2061, %v2074
  %v2076 = vadd.f32 %v2075, 0.014752088
  %v2077 = vmul.f32 %v2061, %v2076
  %v2078 = vadd.f32 %v2077, 0.112945676
  %v2079 = vmul.f32 %v2061, %v2078
  %v2080 = vadd.f32 %v2079, 0.4994258
  %v2081 = vmul.f32 %v2061, %v2080
  %v2082 = vadd.f32 %v2081, 1.0
  %v2083 = vrcp.pop %v2082
  %v2084 = vmul.f32 %v2082, %v2083
  %v2085 = vsub.f32 1.0, %v2084
  %v2086 = vmul.f32 %v2083, %v2085
  %v2087 = vadd.f32 %v2083, %v2086
  %vm2088 = vweird.f32 %v2082
  %vm2089 = vweird.f32 %v2083
  %vm2090 = vmor %vm2088, %vm2089
  %v2091 = vsel %vm2090, %v2083, %v2087
  %v2092 = vand.u32 2147483647, %v2082
  %vm2093 = vcmp.eq.f32.partialorder %v2092, 8.507059e+37
  %v2094 = vand.u32 %v2082, 2147483648
  %v2095 = vor.u32 1.1754944e-38, %v2094
  %v2096 = vsel %vm2093, %v2095, %v2091
  %v2097 = vmul.f32 %v2072, %v2096
  %v2098 = vmin.f32 %v2097, 1.0
  %v2099 = vmax.f32 %v2098, -1.0
  %v2100 = vadd.f32 %v1979, 1.0
  %v2101 = vadd.f32 %v2019, 1.0
  %v2102 = vadd.f32 %v2059, 1.0
  %v2103 = vadd.f32 %v2099, 1.0
  %v2104 = vmul.f32 %v1932, %v2100
  %v2105 = vmul.f32 %v1933, %v2101
  %v2106 = vmul.f32 %v1934, %v2102
  %v2107 = vmul.f32 %v1935, %v2103
  %s2108 = scalar_lea.vmem %s2, 80
  %v2109 = vld [vmem:[%s2108] sm:$0xff]
  %v2110 = vld [vmem:[%s2108 + $0x8] sm:$0xff]
  %2111 = vset.pattern.permute.xlu0 23
  %2112 = vperm.xlu0 %2111, %v55
  %v2113 = vpop.permute.xlu0 %2112
  %2115 = vset.pattern.permute.xlu0 23
  %2116 = vperm.xlu0 %2115, %v56
  %v2117 = vpop.permute.xlu0 %2116
  %v2120 = vsel %vm383, %v2109, 0
  %v2123 = vsel %vm383, %v2110, 0
  %2125 = vmatpush.msra.mxu0 0.0
  %2126 = vmatpush.msra.mxu0 0.0
  %2127 = vmatpush.msra.mxu0 0.0
  %2128 = vmatpush.msra.mxu0 0.0
  %2129 = vmatpush.msra.mxu0 0.0
  %2130 = vmatpush.msra.mxu0 0.0
  %2131 = vmatpush.msra.mxu0 0.0
  %2132 = vmatpush.msra.mxu0 0.0
  %2133 = vmatpush.msra.mxu0 0.0
  %2134 = vmatpush.msra.mxu0 0.0
  %2135 = vmatpush.msra.mxu0 0.0
  %2136 = vmatpush.msra.mxu0 0.0
  %2137 = vmatpush.msra.mxu0 %v2107
  %2138 = vmatpush.msra.mxu0 %v2106
  %2139 = vmatpush.msra.mxu0 %v2105
  %2140 = vmatpush.msra.mxu0 %v2104
  %2141 = vmatmul.f32.gmra.mxu0 %v2120
  %v2142 = vpop.f32.mrf.mxu0
  %v2143 = vadd.f32 %v2113, %v2142
  %2144 = vmatmul.f32.gmra.mxu0 %v2123
  %v2145 = vpop.f32.mrf.mxu0
  %v2146 = vadd.f32 %v2117, %v2145
  %2147 = vdwg.mxu0
  %v2148 = vadd.f32 %v1803, %v2143
  %v2149 = vadd.f32 %v1804, %v2146
  %v2150 = vmul.f32 %v2148, %v54
  %v2151 = vmul.f32 %v2149, %v54
  %v2152 = vmul.f32 %v2150, %v54
  %v2153 = vmul.f32 %v2151, %v54
  %v2154 = vadd.f32 %v2152, %v2153
  %v2155 = vrot.slane %v2154, 4
  %v2156 = vadd.f32 %v2154, %v2155
  %v2157 = vrot.slane %v2156, 2
  %v2158 = vadd.f32 %v2156, %v2157
  %v2159 = vrot.slane %v2158, 1
  %v2160 = vadd.f32 %v2158, %v2159
  %v2161 = vmul.f32 %v2160, %v72
  %v2162 = vsub.f32 %v2152, %v2161
  %v2163 = vsub.f32 %v2153, %v2161
  %v2164 = vmul.f32 %v2162, %v2162
  %v2165 = vmul.f32 %v2163, %v2163
  %v2166 = vadd.f32 %v2164, %v2165
  %v2167 = vrot.slane %v2166, 4
  %v2168 = vadd.f32 %v2166, %v2167
  %v2169 = vrot.slane %v2168, 2
  %v2170 = vadd.f32 %v2168, %v2169
  %v2171 = vrot.slane %v2170, 1
  %v2172 = vadd.f32 %v2170, %v2171
  %v2173 = vmul.f32 %v2172, %v72
  %v2174 = vadd.f32 %v2173, 1e-05
  %v2175 = vrsqrt.pop %v2174
  %v2176 = vmul.f32 %v2175, %v2174
  %v2177 = vmul.f32 %v2176, %v2175
  %v2178 = vmul.f32 0.5, %v2177
  %v2179 = vsub.f32 1.5, %v2178
  %v2180 = vmul.f32 %v2175, %v2179
  %vm2181 = vweird.f32 %v2174
  %vm2182 = vweird.f32 %v2175
  %vm2183 = vmor %vm2181, %vm2182
  %v2184 = vsel %vm2183, %v2175, %v2180
  %v2185 = vmul.f32 %v2162, %v2184
  %v2186 = vmul.f32 %v2163, %v2184
  %2187 = vset.pattern.permute.xlu0 24
  %2188 = vperm.xlu0 %2187, %v55
  %v2189 = vpop.permute.xlu0 %2188
  %2191 = vset.pattern.permute.xlu0 24
  %2192 = vperm.xlu0 %2191, %v56
  %v2193 = vpop.permute.xlu0 %2192
  %v2195 = vmul.f32 %v2185, %v2189
  %v2196 = vmul.f32 %v2186, %v2193
  %2197 = vset.pattern.permute.xlu0 25
  %2198 = vperm.xlu0 %2197, %v55
  %v2199 = vpop.permute.xlu0 %2198
  %2201 = vset.pattern.permute.xlu0 25
  %2202 = vperm.xlu0 %2201, %v56
  %v2203 = vpop.permute.xlu0 %2202
  %v2205 = vadd.f32 %v2195, %v2199
  %v2206 = vadd.f32 %v2196, %v2203
  %v2207 = vmul.f32 %v2205, %v54
  %v2208 = vmul.f32 %v2206, %v54
  %v2209 = vld [vmem:[%s3] sm:$0xff]
  %v2210 = vld [vmem:[%s3 + $0x8] sm:$0xff]
  %2211 = vrot.lane.b32.xlu0 %v2207, 1
  %v2212 = vpop.permute.xlu0 %2211
  %2213 = vrot.lane.b32.xlu0 %v2208, 1
  %v2214 = vpop.permute.xlu0 %2213
  %v2215 = vmul.f32 %v2212, %v27
  %v2216 = vmul.f32 %v2214, %v27
  %2217 = vrot.lane.b32.xlu0 %v2207, 127
  %v2218 = vpop.permute.xlu0 %2217
  %2219 = vrot.lane.b32.xlu0 %v2208, 127
  %v2220 = vpop.permute.xlu0 %2219
  %v2221 = vmul.f32 %v2218, %v30
  %v2222 = vmul.f32 %v2220, %v30
  %2223 = vset.pattern.permute.xlu0 26
  %2224 = vperm.xlu0 %2223, %v55
  %v2225 = vpop.permute.xlu0 %2224
  %2227 = vset.pattern.permute.xlu0 26
  %2228 = vperm.xlu0 %2227, %v56
  %v2229 = vpop.permute.xlu0 %2228
  %v2232 = vsel %vm155, %v2209, 0
  %v2235 = vsel %vm155, %v2210, 0
  %2237 = vmatpush.msra.mxu0 0.0
  %2238 = vmatpush.msra.mxu0 0.0
  %2239 = vmatpush.msra.mxu0 0.0
  %2240 = vmatpush.msra.mxu0 0.0
  %2241 = vmatpush.msra.mxu0 0.0
  %2242 = vmatpush.msra.mxu0 0.0
  %2243 = vmatpush.msra.mxu0 0.0
  %2244 = vmatpush.msra.mxu0 0.0
  %2245 = vmatpush.msra.mxu0 0.0
  %2246 = vmatpush.msra.mxu0 0.0
  %2247 = vmatpush.msra.mxu0 %v2222
  %2248 = vmatpush.msra.mxu0 %v2221
  %2249 = vmatpush.msra.mxu0 %v2208
  %2250 = vmatpush.msra.mxu0 %v2207
  %2251 = vmatpush.msra.mxu0 %v2216
  %2252 = vmatpush.msra.mxu0 %v2215
  %2253 = vmatmul.f32.gmra.mxu0 %v2232
  %v2254 = vpop.f32.mrf.mxu0
  %v2255 = vadd.f32 %v2225, %v2254
  %2256 = vmatmul.f32.gmra.mxu0 %v2235
  %v2257 = vpop.f32.mrf.mxu0
  %v2258 = vadd.f32 %v2229, %v2257
  %2259 = vdwg.mxu0
  %v2260 = vmul.f32 %v2255, %v54
  %v2261 = vmul.f32 %v2258, %v54
  %2262 = vst [vmem:[%s5] sm:$0xff] %v2260
  %2263 = vst [vmem:[%s5 + $0x8] sm:$0xff] %v2261
  // Predicated region
  $region22: #{conv_blocks.1} parent=0 // pred_check
    _
  $region23: #{conv_blocks.1} parent=0 // pred_check_branch
    %2265 = sbr.rel (0) target = $region25
  $region24: #{conv_blocks.1} parent=0 // pred_region
    _
  $region25: #{conv_blocks.1} parent=0 // pred_fallthru
    _
  // Predicated region
  $region26: #{conv_blocks.1} parent=0 // pred_check
    _
  $region27: #{conv_blocks.1} parent=0 // pred_check_branch
    %2267 = sbr.rel (0) target = $region29
  $region28: #{conv_blocks.1} parent=0 // pred_region
    _
  $region29: #{conv_blocks.1} parent=0 // pred_fallthru
    _

</llo_original>
